<compile_context>
chip_gen: v7x
topology: tpu7x:2x2x1
jax: 0.10.0
libtpu: 0.0.40
codegen_flags: <defaults>
</compile_context>

<pallas_src>
import functools

import jax
import jax.numpy as jnp
from jax.experimental import pallas as pl
from jax.experimental.pallas import tpu as pltpu


# ----------------------------- model sizes -----------------------------
VOCAB = 50            # word_vectors.shape[0]
VOCAB_PAD = 64        # embedding rows padded to a 16-row (bf16 tile) boundary
EMB = 16              # word_vectors.shape[1]
LABEL = 8             # label_size
HIDDEN = 32           # hidden_size
OUT = VOCAB           # output_size
OUT_PAD = 128         # logits padded to one full 128-lane vreg
SEQ = 8               # number of fused decode steps (>= 8 rows per matmul)

# ---- weight-slab row offsets (all multiples of 16 -> bf16-tile aligned) ----
R_TABLE = 0                    # (VOCAB, EMB)  embedding table     rows 0..63
R_WC = 64                      # (EMB, H)      combine, emb part   rows 64..79
R_W1 = 80                      # (H, H)        fc1                 rows 80..111
R_W2 = 112                     # (H, H)        fc2                 rows 112..143
R_WIH = 144                    # (H, 3H)       GRU input  [r|z|n]  rows 144..175
R_WHH = 176                    # (H, 3H)       GRU hidden [r|z|n]  rows 176..207
R_WOH = 208                    # (H, OUT_PAD)  out, gru rows       rows 208..239
R_WOE = 240                    # (EMB, OUT_PAD) out, emb rows      rows 240..255
W_ROWS = 256

# ---- bias-slab rows (f32, 128 lanes each) ----
B_COMBINE = 0                  # bc + cls @ wc[EMB:]          (32 lanes)
B_FC1 = 1                      # b1                           (32 lanes)
B_FC2 = 2                      # b2                           (32 lanes)
B_GI = 3                       # [b_ir+b_hr | b_iz+b_hz | b_in]  (96 lanes)
B_GH = 4                       # [0 | 0 | b_hn]                  (96 lanes)
B_OUT = 5                      # bo + cls @ wo[H:H+LABEL]; padded cols = -1e30
B_ROWS = 6


def decoder_kernel(idx_ref, h0_ref, w_ref, b_ref, logp_ref, hout_ref):
    """Runs T decode steps with all weights VMEM-resident.

    idx_ref : (T, 1)        int32   token indices
    h0_ref  : (1, H)        f32     initial GRU hidden state
    w_ref   : (256, 128)    bf16    row-stacked weight slab
    b_ref   : (6, 128)      f32     bias slab (cls contribution pre-folded)
    logp_ref: (T, 128)      f32     per-step log-softmax (padded lanes)
    hout_ref: (1, H)        f32     final hidden state
    """
    f32 = jnp.float32
    bf16 = jnp.bfloat16
    dot = functools.partial(jnp.dot, preferred_element_type=f32)
    T = idx_ref.shape[0]
    H = HIDDEN

    # ---- embedding lookup for all T tokens (one-hot matmul gather) ----
    idx = idx_ref[...]                                                # (T, 1) i32
    iota = jax.lax.broadcasted_iota(jnp.int32, (T, VOCAB_PAD), 1)
    one_hot = (iota == idx).astype(bf16)                              # (T, 64)
    emb = dot(one_hot, w_ref[R_TABLE:R_TABLE + VOCAB_PAD, 0:EMB])     # (T, EMB) f32
    emb_bf = emb.astype(bf16)                                         # exact (table is bf16)

    # ---- combine -> relu -> fc1 -> relu -> fc2 -> relu  (cls folded in bias) ----
    # (dropout == identity in eval mode)
    x = jnp.maximum(dot(emb_bf, w_ref[R_WC:R_WC + EMB, 0:H])
                    + b_ref[B_COMBINE:B_COMBINE + 1, 0:H], 0.0)
    x = jnp.maximum(dot(x.astype(bf16), w_ref[R_W1:R_W1 + H, 0:H])
                    + b_ref[B_FC1:B_FC1 + 1, 0:H], 0.0)
    x = jnp.maximum(dot(x.astype(bf16), w_ref[R_W2:R_W2 + H, 0:H])
                    + b_ref[B_FC2:B_FC2 + 1, 0:H], 0.0)               # (T, H) f32

    # ---- GRU input projections for all T steps: ONE fused (T,32)@(32,96) dot ----
    gi = dot(x.astype(bf16), w_ref[R_WIH:R_WIH + H, 0:3 * H]) \
        + b_ref[B_GI:B_GI + 1, 0:3 * H]                               # (T, 3H) f32

    # ---- sequential GRU recurrence: one fused (1,32)@(32,96) MXU pass / step ----
    wh = w_ref[R_WHH:R_WHH + H, 0:3 * H]                              # hoisted (32, 96) bf16
    bh = b_ref[B_GH:B_GH + 1, 0:3 * H]                                # hoisted (1, 96) f32
    h = h0_ref[...]                                                   # (1, H) f32
    hs = []
    for t in range(T):
        gh = dot(h.astype(bf16), wh) + bh                             # (1, 3H) f32
        r = jax.nn.sigmoid(gi[t:t + 1, 0:H] + gh[:, 0:H])
        z = jax.nn.sigmoid(gi[t:t + 1, H:2 * H] + gh[:, H:2 * H])
        n = jnp.tanh(gi[t:t + 1, 2 * H:3 * H] + r * gh[:, 2 * H:3 * H])
        h = (1.0 - z) * n + z * h
        hs.append(h)
    hout_ref[...] = h
    hseq = jnp.concatenate(hs, axis=0)                                # (T, H) f32

    # ---- out(cat(gru_out, cls, emb)) + log_softmax, batched over T ----
    # cls contribution folded into the output bias; padded bias cols are -1e30
    # so padded logits vanish in the softmax without an explicit mask op.
    logits = (dot(hseq.astype(bf16), w_ref[R_WOH:R_WOH + H, :])
              + dot(emb_bf, w_ref[R_WOE:R_WOE + EMB, :])
              + b_ref[B_OUT:B_OUT + 1, :])                            # (T, 128) f32
    m = jnp.max(logits, axis=1, keepdims=True)
    shifted = logits - m
    lse = jnp.log(jnp.sum(jnp.exp(shifted), axis=1, keepdims=True))
    logp_ref[...] = shifted - lse


def decoder_forward(packed, token_ids, hidden, nlg_class):
    """token_ids: (T,) int32; hidden: (1,1,H) f32; nlg_class: (LABEL,) f32.

    Returns (log_probs (T, OUT), final hidden (1,1,H)); step t applies the
    original DecoderRNN.forward (eval mode) with hidden carried between steps.
    """
    T = int(token_ids.shape[0])
    H = HIDDEN
    P = jax.lax.Precision.HIGHEST

    idx = jnp.asarray(token_ids, jnp.int32).reshape(T, 1)
    h0 = hidden.reshape(1, H).astype(jnp.float32)
    cls = nlg_class.reshape(1, LABEL).astype(jnp.float32)

    # Fold the constant nlg_class contribution into effective biases (f32).
    bc_eff = packed["bc"] + jnp.dot(cls, packed["wc_cls"], precision=P)   # (1, H)
    bo_eff = packed["bo"] + jnp.dot(cls, packed["wo_cls"], precision=P)   # (1, OUT)
    b_ih, b_hh = packed["b_ih"], packed["b_hh"]
    gi_bias = jnp.concatenate(
        [b_ih[:, 0:H] + b_hh[:, 0:H],
         b_ih[:, H:2 * H] + b_hh[:, H:2 * H],
         b_ih[:, 2 * H:]], axis=1)                                        # (1, 3H)

    b = jnp.zeros((B_ROWS, OUT_PAD), jnp.float32)
    b = b.at[B_COMBINE, 0:H].set(bc_eff[0])
    b = b.at[B_FC1, 0:H].set(packed["b1"][0])
    b = b.at[B_FC2, 0:H].set(packed["b2"][0])
    b = b.at[B_GI, 0:3 * H].set(gi_bias[0])
    b = b.at[B_GH, 2 * H:3 * H].set(b_hh[0, 2 * H:])
    b = b.at[B_OUT, :].set(jnp.full((OUT_PAD,), -1e30, jnp.float32))
    b = b.at[B_OUT, 0:OUT].set(bo_eff[0])

    vmem = pl.BlockSpec(memory_space=pltpu.MemorySpace.VMEM)
    logp_pad, h_new = pl.pallas_call(
        decoder_kernel,
        out_shape=(
            jax.ShapeDtypeStruct((T, OUT_PAD), jnp.float32),
            jax.ShapeDtypeStruct((1, H), jnp.float32),
        ),
        in_specs=[vmem, vmem, vmem, vmem],
        out_specs=(vmem, vmem),
    )(idx, h0, packed["w_slab"], b)

    return logp_pad[:, :OUT], h_new.reshape(1, 1, H)


# ----------------------------- parameters -----------------------------
def init_params(key):
    """Deterministic synthetic parameters (PyTorch-equivalent layout,
    stored transposed as (in_features, out_features))."""
    ks = jax.random.split(key, 16)
    f = jnp.float32

    def u(k, shape, fan_in):
        bound = 1.0 / (float(fan_in) ** 0.5)
        return jax.random.uniform(k, shape, f, -bound, bound)

    return {
        "embedding": jax.random.normal(ks[0], (VOCAB, EMB), f) * 0.1,
        # combine: Linear(EMB + LABEL, HIDDEN)
        "wc": u(ks[1], (EMB + LABEL, HIDDEN), EMB + LABEL),
        "bc": u(ks[2], (1, HIDDEN), EMB + LABEL),
        "w1": u(ks[3], (HIDDEN, HIDDEN), HIDDEN),
        "b1": u(ks[4], (1, HIDDEN), HIDDEN),
        "w2": u(ks[5], (HIDDEN, HIDDEN), HIDDEN),
        "b2": u(ks[6], (1, HIDDEN), HIDDEN),
        # GRU weights packed (in, 3H), PyTorch gate order [r | z | n]
        "w_ih": u(ks[7], (HIDDEN, 3 * HIDDEN), HIDDEN),
        "b_ih": u(ks[8], (1, 3 * HIDDEN), HIDDEN),
        "w_hh": u(ks[9], (HIDDEN, 3 * HIDDEN), HIDDEN),
        "b_hh": u(ks[10], (1, 3 * HIDDEN), HIDDEN),
        # out: Linear(HIDDEN + LABEL + EMB, OUT)
        "wo": u(ks[11], (HIDDEN + LABEL + EMB, OUT), HIDDEN + LABEL + EMB),
        "bo": u(ks[12], (1, OUT), HIDDEN + LABEL + EMB),
    }


def pack_params(raw):
    """Repack for the kernel: one bf16 weight slab (tile-aligned row blocks,
    128 padded lanes) plus the f32 pieces needed for per-call bias folding."""
    H = HIDDEN
    bf16 = jnp.bfloat16
    w = jnp.zeros((W_ROWS, OUT_PAD), bf16)
    w = w.at[R_TABLE:R_TABLE + VOCAB, 0:EMB].set(raw["embedding"].astype(bf16))
    w = w.at[R_WC:R_WC + EMB, 0:H].set(raw["wc"][:EMB].astype(bf16))
    w = w.at[R_W1:R_W1 + H, 0:H].set(raw["w1"].astype(bf16))
    w = w.at[R_W2:R_W2 + H, 0:H].set(raw["w2"].astype(bf16))
    w = w.at[R_WIH:R_WIH + H, 0:3 * H].set(raw["w_ih"].astype(bf16))
    w = w.at[R_WHH:R_WHH + H, 0:3 * H].set(raw["w_hh"].astype(bf16))
    w = w.at[R_WOH:R_WOH + H, 0:OUT].set(raw["wo"][:H].astype(bf16))
    w = w.at[R_WOE:R_WOE + EMB, 0:OUT].set(raw["wo"][H + LABEL:].astype(bf16))
    return {
        "w_slab": w,
        "wc_cls": raw["wc"][EMB:],             # (LABEL, H)   f32
        "wo_cls": raw["wo"][H:H + LABEL],      # (LABEL, OUT) f32
        "bc": raw["bc"], "b1": raw["b1"], "b2": raw["b2"],
        "b_ih": raw["b_ih"], "b_hh": raw["b_hh"], "bo": raw["bo"],
    }


# ----------------------------- reference -----------------------------
def reference_forward(raw, token_ids, hidden, nlg_class, matmul_dtype=jnp.float32):
    """Pure-JAX mirror of the PyTorch forward, applied step by step.

    With matmul_dtype=bf16 it reproduces the kernel's numerics (bf16 matmul
    operands, f32 accumulation, cls folded into f32 biases); with f32 it is the
    full-precision forward.
    """
    P = jax.lax.Precision.HIGHEST
    md = matmul_dtype

    def mm(a, w):
        return jnp.dot(a.astype(md), w.astype(md), precision=P,
                       preferred_element_type=jnp.float32)

    H = HIDDEN
    cls = nlg_class.reshape(1, LABEL).astype(jnp.float32)
    wc_emb, wc_cls = raw["wc"][:EMB], raw["wc"][EMB:]
    wo_h, wo_cls, wo_e = raw["wo"][:H], raw["wo"][H:H + LABEL], raw["wo"][H + LABEL:]
    bc_eff = raw["bc"] + jnp.dot(cls, wc_cls, precision=P)
    bo_eff = raw["bo"] + jnp.dot(cls, wo_cls, precision=P)
    b_ih, b_hh = raw["b_ih"], raw["b_hh"]

    h = hidden.reshape(1, H).astype(jnp.float32)
    outs = []
    for t in range(token_ids.shape[0]):
        emb = raw["embedding"][token_ids[t]].astype(md).astype(jnp.float32).reshape(1, EMB)
        x = jax.nn.relu(mm(emb, wc_emb) + bc_eff)
        x = jax.nn.relu(mm(x, raw["w1"]) + raw["b1"])
        x = jax.nn.relu(mm(x, raw["w2"]) + raw["b2"])
        gi = mm(x, raw["w_ih"]) + b_ih
        gh = mm(h, raw["w_hh"]) + b_hh
        r = jax.nn.sigmoid(gi[:, :H] + gh[:, :H])
        z = jax.nn.sigmoid(gi[:, H:2 * H] + gh[:, H:2 * H])
        n = jnp.tanh(gi[:, 2 * H:] + r * gh[:, 2 * H:])
        h = (1.0 - z) * n + z * h
        logits = mm(h, wo_h) + mm(emb, wo_e) + bo_eff
        outs.append(jax.nn.log_softmax(logits, axis=1))
    return jnp.concatenate(outs, axis=0), h.reshape(1, 1, H)


if __name__ == "__main__":
    key = jax.random.PRNGKey(0)
    k_par, k_cls, k_tok = jax.random.split(key, 3)

    raw = init_params(k_par)
    packed = pack_params(raw)

    token_ids = jax.random.randint(k_tok, (SEQ,), 0, VOCAB, jnp.int32)  # decoder inputs
    nlg_class = jax.random.normal(k_cls, (LABEL,), jnp.float32)         # label vector
    hidden = jnp.zeros((1, 1, HIDDEN), jnp.float32)                     # initHidden()

    logp, h_new = decoder_forward(packed, token_ids, hidden, nlg_class)
    jax.block_until_ready((logp, h_new))

    assert logp.shape == (SEQ, OUT) and h_new.shape == (1, 1, HIDDEN)
    # log_softmax rows must sum to ~1 in probability space
    assert jnp.allclose(jnp.sum(jnp.exp(logp), axis=1), 1.0, atol=1e-4)

    # kernel-logic check vs. a reference with identical bf16-matmul numerics
    ref_logp, ref_h = reference_forward(raw, token_ids, hidden, nlg_class, jnp.bfloat16)
    assert jnp.allclose(logp, ref_logp, atol=5e-3), float(jnp.max(jnp.abs(logp - ref_logp)))
    assert jnp.allclose(h_new, ref_h, atol=5e-3)

    # sanity vs. the full-f32 forward (bf16 weights are a deliberate perf tradeoff)
    f32_logp, f32_h = reference_forward(raw, token_ids, hidden, nlg_class, jnp.float32)
    assert jnp.allclose(logp, f32_logp, atol=1e-1), float(jnp.max(jnp.abs(logp - f32_logp)))
    assert jnp.allclose(h_new, f32_h, atol=1e-1)

    print("KERNEL_OK")
</pallas_src>

<mosaic_0001>
module attributes {stable_mosaic.version = 11 : i64} {
  func.func @decoder_kernel(%arg0: memref<8x1xi32, #tpu.memory_space<vmem>>, %arg1: memref<1x32xf32, #tpu.memory_space<vmem>>, %arg2: memref<256x128xbf16, #tpu.memory_space<vmem>>, %arg3: memref<6x128xf32, #tpu.memory_space<vmem>>, %arg4: memref<8x128xf32, #tpu.memory_space<vmem>>, %arg5: memref<1x32xf32, #tpu.memory_space<vmem>>) attributes {dimension_semantics = [], scalar_prefetch = 0 : i64, scratch_operands = 0 : i64, tpu.core_type = #tpu.core_type<tc>} {
    %c0 = arith.constant 0 : index
    %c0_0 = arith.constant 0 : index
    %0 = vector.load %arg0[%c0, %c0_0] : memref<8x1xi32, #tpu.memory_space<vmem>>, vector<8x1xi32>
    %1 = tpu.iota {dimensions = array<i32: 1>} : vector<8x64xi32>
    %2 = vector.broadcast %0 : vector<8x1xi32> to vector<8x64xi32>
    %3 = arith.cmpi eq, %1, %2 : vector<8x64xi32>
    %4 = arith.extui %3 : vector<8x64xi1> to vector<8x64xi32>
    %5 = arith.sitofp %4 : vector<8x64xi32> to vector<8x64xf32>
    %6 = arith.truncf %5 : vector<8x64xf32> to vector<8x64xbf16>
    %c0_1 = arith.constant 0 : index
    %c0_2 = arith.constant 0 : index
    %7 = vector.load %arg2[%c0_1, %c0_2] : memref<256x128xbf16, #tpu.memory_space<vmem>>, vector<64x16xbf16>
    %cst = arith.constant dense<0.000000e+00> : vector<8x16xf32>
    %8 = tpu.matmul %6, %7, %cst {dimension_numbers = #tpu.dot_dimension_numbers<[1], [0], [0], [1], [0, 0, 1, 1], [], []>} : vector<8x64xbf16>, vector<64x16xbf16>, vector<8x16xf32> -> vector<8x16xf32>
    %9 = arith.truncf %8 : vector<8x16xf32> to vector<8x16xbf16>
    %c64 = arith.constant 64 : index
    %c0_3 = arith.constant 0 : index
    %10 = vector.load %arg2[%c64, %c0_3] : memref<256x128xbf16, #tpu.memory_space<vmem>>, vector<16x32xbf16>
    %cst_4 = arith.constant dense<0.000000e+00> : vector<8x32xf32>
    %11 = tpu.matmul %9, %10, %cst_4 {dimension_numbers = #tpu.dot_dimension_numbers<[1], [0], [0], [1], [0, 0, 1, 1], [], []>} : vector<8x16xbf16>, vector<16x32xbf16>, vector<8x32xf32> -> vector<8x32xf32>
    %c0_5 = arith.constant 0 : index
    %c0_6 = arith.constant 0 : index
    %12 = vector.load %arg3[%c0_5, %c0_6] : memref<6x128xf32, #tpu.memory_space<vmem>>, vector<1x32xf32>
    %13 = vector.broadcast %12 : vector<1x32xf32> to vector<8x32xf32>
    %14 = arith.addf %11, %13 : vector<8x32xf32>
    %cst_7 = arith.constant 0.000000e+00 : f32
    %15 = vector.broadcast %cst_7 : f32 to vector<8x32xf32>
    %16 = arith.maximumf %14, %15 : vector<8x32xf32>
    %17 = arith.truncf %16 : vector<8x32xf32> to vector<8x32xbf16>
    %c80 = arith.constant 80 : index
    %c0_8 = arith.constant 0 : index
    %18 = vector.load %arg2[%c80, %c0_8] : memref<256x128xbf16, #tpu.memory_space<vmem>>, vector<32x32xbf16>
    %cst_9 = arith.constant dense<0.000000e+00> : vector<8x32xf32>
    %19 = tpu.matmul %17, %18, %cst_9 {dimension_numbers = #tpu.dot_dimension_numbers<[1], [0], [0], [1], [0, 0, 1, 1], [], []>} : vector<8x32xbf16>, vector<32x32xbf16>, vector<8x32xf32> -> vector<8x32xf32>
    %c1 = arith.constant 1 : index
    %c0_10 = arith.constant 0 : index
    %20 = vector.load %arg3[%c1, %c0_10] : memref<6x128xf32, #tpu.memory_space<vmem>>, vector<1x32xf32>
    %21 = vector.broadcast %20 : vector<1x32xf32> to vector<8x32xf32>
    %22 = arith.addf %19, %21 : vector<8x32xf32>
    %cst_11 = arith.constant 0.000000e+00 : f32
    %23 = vector.broadcast %cst_11 : f32 to vector<8x32xf32>
    %24 = arith.maximumf %22, %23 : vector<8x32xf32>
    %25 = arith.truncf %24 : vector<8x32xf32> to vector<8x32xbf16>
    %c112 = arith.constant 112 : index
    %c0_12 = arith.constant 0 : index
    %26 = vector.load %arg2[%c112, %c0_12] : memref<256x128xbf16, #tpu.memory_space<vmem>>, vector<32x32xbf16>
    %cst_13 = arith.constant dense<0.000000e+00> : vector<8x32xf32>
    %27 = tpu.matmul %25, %26, %cst_13 {dimension_numbers = #tpu.dot_dimension_numbers<[1], [0], [0], [1], [0, 0, 1, 1], [], []>} : vector<8x32xbf16>, vector<32x32xbf16>, vector<8x32xf32> -> vector<8x32xf32>
    %c2 = arith.constant 2 : index
    %c0_14 = arith.constant 0 : index
    %28 = vector.load %arg3[%c2, %c0_14] : memref<6x128xf32, #tpu.memory_space<vmem>>, vector<1x32xf32>
    %29 = vector.broadcast %28 : vector<1x32xf32> to vector<8x32xf32>
    %30 = arith.addf %27, %29 : vector<8x32xf32>
    %cst_15 = arith.constant 0.000000e+00 : f32
    %31 = vector.broadcast %cst_15 : f32 to vector<8x32xf32>
    %32 = arith.maximumf %30, %31 : vector<8x32xf32>
    %33 = arith.truncf %32 : vector<8x32xf32> to vector<8x32xbf16>
    %c144 = arith.constant 144 : index
    %c0_16 = arith.constant 0 : index
    %34 = vector.load %arg2[%c144, %c0_16] : memref<256x128xbf16, #tpu.memory_space<vmem>>, vector<32x96xbf16>
    %cst_17 = arith.constant dense<0.000000e+00> : vector<8x96xf32>
    %35 = tpu.matmul %33, %34, %cst_17 {dimension_numbers = #tpu.dot_dimension_numbers<[1], [0], [0], [1], [0, 0, 1, 1], [], []>} : vector<8x32xbf16>, vector<32x96xbf16>, vector<8x96xf32> -> vector<8x96xf32>
    %c3 = arith.constant 3 : index
    %c0_18 = arith.constant 0 : index
    %36 = vector.load %arg3[%c3, %c0_18] : memref<6x128xf32, #tpu.memory_space<vmem>>, vector<1x96xf32>
    %37 = vector.broadcast %36 : vector<1x96xf32> to vector<8x96xf32>
    %38 = arith.addf %35, %37 : vector<8x96xf32>
    %c176 = arith.constant 176 : index
    %c0_19 = arith.constant 0 : index
    %39 = vector.load %arg2[%c176, %c0_19] : memref<256x128xbf16, #tpu.memory_space<vmem>>, vector<32x96xbf16>
    %c4 = arith.constant 4 : index
    %c0_20 = arith.constant 0 : index
    %40 = vector.load %arg3[%c4, %c0_20] : memref<6x128xf32, #tpu.memory_space<vmem>>, vector<1x96xf32>
    %c0_21 = arith.constant 0 : index
    %c0_22 = arith.constant 0 : index
    %41 = vector.load %arg1[%c0_21, %c0_22] : memref<1x32xf32, #tpu.memory_space<vmem>>, vector<1x32xf32>
    %42 = arith.truncf %41 : vector<1x32xf32> to vector<1x32xbf16>
    %cst_23 = arith.constant dense<0.000000e+00> : vector<1x96xf32>
    %43 = tpu.matmul %42, %39, %cst_23 {dimension_numbers = #tpu.dot_dimension_numbers<[1], [0], [0], [1], [0, 0, 1, 1], [], []>} : vector<1x32xbf16>, vector<32x96xbf16>, vector<1x96xf32> -> vector<1x96xf32>
    %44 = arith.addf %43, %40 : vector<1x96xf32>
    %45 = vector.extract_strided_slice %38 {offsets = [0, 0], sizes = [1, 32], strides = [1, 1]} : vector<8x96xf32> to vector<1x32xf32>
    %46 = vector.extract_strided_slice %44 {offsets = [0, 0], sizes = [1, 32], strides = [1, 1]} : vector<1x96xf32> to vector<1x32xf32>
    %47 = arith.addf %45, %46 : vector<1x32xf32>
    %48 = arith.negf %47 : vector<1x32xf32>
    %49 = math.exp %48 : vector<1x32xf32>
    %cst_24 = arith.constant 1.000000e+00 : f32
    %50 = vector.broadcast %cst_24 : f32 to vector<1x32xf32>
    %51 = arith.addf %50, %49 : vector<1x32xf32>
    %52 = arith.divf %50, %51 : vector<1x32xf32>
    %53 = vector.extract_strided_slice %38 {offsets = [0, 32], sizes = [1, 32], strides = [1, 1]} : vector<8x96xf32> to vector<1x32xf32>
    %54 = vector.extract_strided_slice %44 {offsets = [0, 32], sizes = [1, 32], strides = [1, 1]} : vector<1x96xf32> to vector<1x32xf32>
    %55 = arith.addf %53, %54 : vector<1x32xf32>
    %56 = arith.negf %55 : vector<1x32xf32>
    %57 = math.exp %56 : vector<1x32xf32>
    %cst_25 = arith.constant 1.000000e+00 : f32
    %58 = vector.broadcast %cst_25 : f32 to vector<1x32xf32>
    %59 = arith.addf %58, %57 : vector<1x32xf32>
    %60 = arith.divf %58, %59 : vector<1x32xf32>
    %61 = vector.extract_strided_slice %38 {offsets = [0, 64], sizes = [1, 32], strides = [1, 1]} : vector<8x96xf32> to vector<1x32xf32>
    %62 = vector.extract_strided_slice %44 {offsets = [0, 64], sizes = [1, 32], strides = [1, 1]} : vector<1x96xf32> to vector<1x32xf32>
    %63 = arith.mulf %52, %62 : vector<1x32xf32>
    %64 = arith.addf %61, %63 : vector<1x32xf32>
    %65 = math.tanh %64 : vector<1x32xf32>
    %cst_26 = arith.constant 1.000000e+00 : f32
    %66 = vector.broadcast %cst_26 : f32 to vector<1x32xf32>
    %67 = arith.subf %66, %60 : vector<1x32xf32>
    %68 = arith.mulf %67, %65 : vector<1x32xf32>
    %69 = arith.mulf %60, %41 : vector<1x32xf32>
    %70 = arith.addf %68, %69 : vector<1x32xf32>
    %71 = arith.truncf %70 : vector<1x32xf32> to vector<1x32xbf16>
    %cst_27 = arith.constant dense<0.000000e+00> : vector<1x96xf32>
    %72 = tpu.matmul %71, %39, %cst_27 {dimension_numbers = #tpu.dot_dimension_numbers<[1], [0], [0], [1], [0, 0, 1, 1], [], []>} : vector<1x32xbf16>, vector<32x96xbf16>, vector<1x96xf32> -> vector<1x96xf32>
    %73 = arith.addf %72, %40 : vector<1x96xf32>
    %74 = vector.extract_strided_slice %38 {offsets = [1, 0], sizes = [1, 32], strides = [1, 1]} : vector<8x96xf32> to vector<1x32xf32>
    %75 = vector.extract_strided_slice %73 {offsets = [0, 0], sizes = [1, 32], strides = [1, 1]} : vector<1x96xf32> to vector<1x32xf32>
    %76 = arith.addf %74, %75 : vector<1x32xf32>
    %77 = arith.negf %76 : vector<1x32xf32>
    %78 = math.exp %77 : vector<1x32xf32>
    %cst_28 = arith.constant 1.000000e+00 : f32
    %79 = vector.broadcast %cst_28 : f32 to vector<1x32xf32>
    %80 = arith.addf %79, %78 : vector<1x32xf32>
    %81 = arith.divf %79, %80 : vector<1x32xf32>
    %82 = vector.extract_strided_slice %38 {offsets = [1, 32], sizes = [1, 32], strides = [1, 1]} : vector<8x96xf32> to vector<1x32xf32>
    %83 = vector.extract_strided_slice %73 {offsets = [0, 32], sizes = [1, 32], strides = [1, 1]} : vector<1x96xf32> to vector<1x32xf32>
    %84 = arith.addf %82, %83 : vector<1x32xf32>
    %85 = arith.negf %84 : vector<1x32xf32>
    %86 = math.exp %85 : vector<1x32xf32>
    %cst_29 = arith.constant 1.000000e+00 : f32
    %87 = vector.broadcast %cst_29 : f32 to vector<1x32xf32>
    %88 = arith.addf %87, %86 : vector<1x32xf32>
    %89 = arith.divf %87, %88 : vector<1x32xf32>
    %90 = vector.extract_strided_slice %38 {offsets = [1, 64], sizes = [1, 32], strides = [1, 1]} : vector<8x96xf32> to vector<1x32xf32>
    %91 = vector.extract_strided_slice %73 {offsets = [0, 64], sizes = [1, 32], strides = [1, 1]} : vector<1x96xf32> to vector<1x32xf32>
    %92 = arith.mulf %81, %91 : vector<1x32xf32>
    %93 = arith.addf %90, %92 : vector<1x32xf32>
    %94 = math.tanh %93 : vector<1x32xf32>
    %cst_30 = arith.constant 1.000000e+00 : f32
    %95 = vector.broadcast %cst_30 : f32 to vector<1x32xf32>
    %96 = arith.subf %95, %89 : vector<1x32xf32>
    %97 = arith.mulf %96, %94 : vector<1x32xf32>
    %98 = arith.mulf %89, %70 : vector<1x32xf32>
    %99 = arith.addf %97, %98 : vector<1x32xf32>
    %100 = arith.truncf %99 : vector<1x32xf32> to vector<1x32xbf16>
    %cst_31 = arith.constant dense<0.000000e+00> : vector<1x96xf32>
    %101 = tpu.matmul %100, %39, %cst_31 {dimension_numbers = #tpu.dot_dimension_numbers<[1], [0], [0], [1], [0, 0, 1, 1], [], []>} : vector<1x32xbf16>, vector<32x96xbf16>, vector<1x96xf32> -> vector<1x96xf32>
    %102 = arith.addf %101, %40 : vector<1x96xf32>
    %103 = vector.extract_strided_slice %38 {offsets = [2, 0], sizes = [1, 32], strides = [1, 1]} : vector<8x96xf32> to vector<1x32xf32>
    %104 = vector.extract_strided_slice %102 {offsets = [0, 0], sizes = [1, 32], strides = [1, 1]} : vector<1x96xf32> to vector<1x32xf32>
    %105 = arith.addf %103, %104 : vector<1x32xf32>
    %106 = arith.negf %105 : vector<1x32xf32>
    %107 = math.exp %106 : vector<1x32xf32>
    %cst_32 = arith.constant 1.000000e+00 : f32
    %108 = vector.broadcast %cst_32 : f32 to vector<1x32xf32>
    %109 = arith.addf %108, %107 : vector<1x32xf32>
    %110 = arith.divf %108, %109 : vector<1x32xf32>
    %111 = vector.extract_strided_slice %38 {offsets = [2, 32], sizes = [1, 32], strides = [1, 1]} : vector<8x96xf32> to vector<1x32xf32>
    %112 = vector.extract_strided_slice %102 {offsets = [0, 32], sizes = [1, 32], strides = [1, 1]} : vector<1x96xf32> to vector<1x32xf32>
    %113 = arith.addf %111, %112 : vector<1x32xf32>
    %114 = arith.negf %113 : vector<1x32xf32>
    %115 = math.exp %114 : vector<1x32xf32>
    %cst_33 = arith.constant 1.000000e+00 : f32
    %116 = vector.broadcast %cst_33 : f32 to vector<1x32xf32>
    %117 = arith.addf %116, %115 : vector<1x32xf32>
    %118 = arith.divf %116, %117 : vector<1x32xf32>
    %119 = vector.extract_strided_slice %38 {offsets = [2, 64], sizes = [1, 32], strides = [1, 1]} : vector<8x96xf32> to vector<1x32xf32>
    %120 = vector.extract_strided_slice %102 {offsets = [0, 64], sizes = [1, 32], strides = [1, 1]} : vector<1x96xf32> to vector<1x32xf32>
    %121 = arith.mulf %110, %120 : vector<1x32xf32>
    %122 = arith.addf %119, %121 : vector<1x32xf32>
    %123 = math.tanh %122 : vector<1x32xf32>
    %cst_34 = arith.constant 1.000000e+00 : f32
    %124 = vector.broadcast %cst_34 : f32 to vector<1x32xf32>
    %125 = arith.subf %124, %118 : vector<1x32xf32>
    %126 = arith.mulf %125, %123 : vector<1x32xf32>
    %127 = arith.mulf %118, %99 : vector<1x32xf32>
    %128 = arith.addf %126, %127 : vector<1x32xf32>
    %129 = arith.truncf %128 : vector<1x32xf32> to vector<1x32xbf16>
    %cst_35 = arith.constant dense<0.000000e+00> : vector<1x96xf32>
    %130 = tpu.matmul %129, %39, %cst_35 {dimension_numbers = #tpu.dot_dimension_numbers<[1], [0], [0], [1], [0, 0, 1, 1], [], []>} : vector<1x32xbf16>, vector<32x96xbf16>, vector<1x96xf32> -> vector<1x96xf32>
    %131 = arith.addf %130, %40 : vector<1x96xf32>
    %132 = vector.extract_strided_slice %38 {offsets = [3, 0], sizes = [1, 32], strides = [1, 1]} : vector<8x96xf32> to vector<1x32xf32>
    %133 = vector.extract_strided_slice %131 {offsets = [0, 0], sizes = [1, 32], strides = [1, 1]} : vector<1x96xf32> to vector<1x32xf32>
    %134 = arith.addf %132, %133 : vector<1x32xf32>
    %135 = arith.negf %134 : vector<1x32xf32>
    %136 = math.exp %135 : vector<1x32xf32>
    %cst_36 = arith.constant 1.000000e+00 : f32
    %137 = vector.broadcast %cst_36 : f32 to vector<1x32xf32>
    %138 = arith.addf %137, %136 : vector<1x32xf32>
    %139 = arith.divf %137, %138 : vector<1x32xf32>
    %140 = vector.extract_strided_slice %38 {offsets = [3, 32], sizes = [1, 32], strides = [1, 1]} : vector<8x96xf32> to vector<1x32xf32>
    %141 = vector.extract_strided_slice %131 {offsets = [0, 32], sizes = [1, 32], strides = [1, 1]} : vector<1x96xf32> to vector<1x32xf32>
    %142 = arith.addf %140, %141 : vector<1x32xf32>
    %143 = arith.negf %142 : vector<1x32xf32>
    %144 = math.exp %143 : vector<1x32xf32>
    %cst_37 = arith.constant 1.000000e+00 : f32
    %145 = vector.broadcast %cst_37 : f32 to vector<1x32xf32>
    %146 = arith.addf %145, %144 : vector<1x32xf32>
    %147 = arith.divf %145, %146 : vector<1x32xf32>
    %148 = vector.extract_strided_slice %38 {offsets = [3, 64], sizes = [1, 32], strides = [1, 1]} : vector<8x96xf32> to vector<1x32xf32>
    %149 = vector.extract_strided_slice %131 {offsets = [0, 64], sizes = [1, 32], strides = [1, 1]} : vector<1x96xf32> to vector<1x32xf32>
    %150 = arith.mulf %139, %149 : vector<1x32xf32>
    %151 = arith.addf %148, %150 : vector<1x32xf32>
    %152 = math.tanh %151 : vector<1x32xf32>
    %cst_38 = arith.constant 1.000000e+00 : f32
    %153 = vector.broadcast %cst_38 : f32 to vector<1x32xf32>
    %154 = arith.subf %153, %147 : vector<1x32xf32>
    %155 = arith.mulf %154, %152 : vector<1x32xf32>
    %156 = arith.mulf %147, %128 : vector<1x32xf32>
    %157 = arith.addf %155, %156 : vector<1x32xf32>
    %158 = arith.truncf %157 : vector<1x32xf32> to vector<1x32xbf16>
    %cst_39 = arith.constant dense<0.000000e+00> : vector<1x96xf32>
    %159 = tpu.matmul %158, %39, %cst_39 {dimension_numbers = #tpu.dot_dimension_numbers<[1], [0], [0], [1], [0, 0, 1, 1], [], []>} : vector<1x32xbf16>, vector<32x96xbf16>, vector<1x96xf32> -> vector<1x96xf32>
    %160 = arith.addf %159, %40 : vector<1x96xf32>
    %161 = vector.extract_strided_slice %38 {offsets = [4, 0], sizes = [1, 32], strides = [1, 1]} : vector<8x96xf32> to vector<1x32xf32>
    %162 = vector.extract_strided_slice %160 {offsets = [0, 0], sizes = [1, 32], strides = [1, 1]} : vector<1x96xf32> to vector<1x32xf32>
    %163 = arith.addf %161, %162 : vector<1x32xf32>
    %164 = arith.negf %163 : vector<1x32xf32>
    %165 = math.exp %164 : vector<1x32xf32>
    %cst_40 = arith.constant 1.000000e+00 : f32
    %166 = vector.broadcast %cst_40 : f32 to vector<1x32xf32>
    %167 = arith.addf %166, %165 : vector<1x32xf32>
    %168 = arith.divf %166, %167 : vector<1x32xf32>
    %169 = vector.extract_strided_slice %38 {offsets = [4, 32], sizes = [1, 32], strides = [1, 1]} : vector<8x96xf32> to vector<1x32xf32>
    %170 = vector.extract_strided_slice %160 {offsets = [0, 32], sizes = [1, 32], strides = [1, 1]} : vector<1x96xf32> to vector<1x32xf32>
    %171 = arith.addf %169, %170 : vector<1x32xf32>
    %172 = arith.negf %171 : vector<1x32xf32>
    %173 = math.exp %172 : vector<1x32xf32>
    %cst_41 = arith.constant 1.000000e+00 : f32
    %174 = vector.broadcast %cst_41 : f32 to vector<1x32xf32>
    %175 = arith.addf %174, %173 : vector<1x32xf32>
    %176 = arith.divf %174, %175 : vector<1x32xf32>
    %177 = vector.extract_strided_slice %38 {offsets = [4, 64], sizes = [1, 32], strides = [1, 1]} : vector<8x96xf32> to vector<1x32xf32>
    %178 = vector.extract_strided_slice %160 {offsets = [0, 64], sizes = [1, 32], strides = [1, 1]} : vector<1x96xf32> to vector<1x32xf32>
    %179 = arith.mulf %168, %178 : vector<1x32xf32>
    %180 = arith.addf %177, %179 : vector<1x32xf32>
    %181 = math.tanh %180 : vector<1x32xf32>
    %cst_42 = arith.constant 1.000000e+00 : f32
    %182 = vector.broadcast %cst_42 : f32 to vector<1x32xf32>
    %183 = arith.subf %182, %176 : vector<1x32xf32>
    %184 = arith.mulf %183, %181 : vector<1x32xf32>
    %185 = arith.mulf %176, %157 : vector<1x32xf32>
    %186 = arith.addf %184, %185 : vector<1x32xf32>
    %187 = arith.truncf %186 : vector<1x32xf32> to vector<1x32xbf16>
    %cst_43 = arith.constant dense<0.000000e+00> : vector<1x96xf32>
    %188 = tpu.matmul %187, %39, %cst_43 {dimension_numbers = #tpu.dot_dimension_numbers<[1], [0], [0], [1], [0, 0, 1, 1], [], []>} : vector<1x32xbf16>, vector<32x96xbf16>, vector<1x96xf32> -> vector<1x96xf32>
    %189 = arith.addf %188, %40 : vector<1x96xf32>
    %190 = vector.extract_strided_slice %38 {offsets = [5, 0], sizes = [1, 32], strides = [1, 1]} : vector<8x96xf32> to vector<1x32xf32>
    %191 = vector.extract_strided_slice %189 {offsets = [0, 0], sizes = [1, 32], strides = [1, 1]} : vector<1x96xf32> to vector<1x32xf32>
    %192 = arith.addf %190, %191 : vector<1x32xf32>
    %193 = arith.negf %192 : vector<1x32xf32>
    %194 = math.exp %193 : vector<1x32xf32>
    %cst_44 = arith.constant 1.000000e+00 : f32
    %195 = vector.broadcast %cst_44 : f32 to vector<1x32xf32>
    %196 = arith.addf %195, %194 : vector<1x32xf32>
    %197 = arith.divf %195, %196 : vector<1x32xf32>
    %198 = vector.extract_strided_slice %38 {offsets = [5, 32], sizes = [1, 32], strides = [1, 1]} : vector<8x96xf32> to vector<1x32xf32>
    %199 = vector.extract_strided_slice %189 {offsets = [0, 32], sizes = [1, 32], strides = [1, 1]} : vector<1x96xf32> to vector<1x32xf32>
    %200 = arith.addf %198, %199 : vector<1x32xf32>
    %201 = arith.negf %200 : vector<1x32xf32>
    %202 = math.exp %201 : vector<1x32xf32>
    %cst_45 = arith.constant 1.000000e+00 : f32
    %203 = vector.broadcast %cst_45 : f32 to vector<1x32xf32>
    %204 = arith.addf %203, %202 : vector<1x32xf32>
    %205 = arith.divf %203, %204 : vector<1x32xf32>
    %206 = vector.extract_strided_slice %38 {offsets = [5, 64], sizes = [1, 32], strides = [1, 1]} : vector<8x96xf32> to vector<1x32xf32>
    %207 = vector.extract_strided_slice %189 {offsets = [0, 64], sizes = [1, 32], strides = [1, 1]} : vector<1x96xf32> to vector<1x32xf32>
    %208 = arith.mulf %197, %207 : vector<1x32xf32>
    %209 = arith.addf %206, %208 : vector<1x32xf32>
    %210 = math.tanh %209 : vector<1x32xf32>
    %cst_46 = arith.constant 1.000000e+00 : f32
    %211 = vector.broadcast %cst_46 : f32 to vector<1x32xf32>
    %212 = arith.subf %211, %205 : vector<1x32xf32>
    %213 = arith.mulf %212, %210 : vector<1x32xf32>
    %214 = arith.mulf %205, %186 : vector<1x32xf32>
    %215 = arith.addf %213, %214 : vector<1x32xf32>
    %216 = arith.truncf %215 : vector<1x32xf32> to vector<1x32xbf16>
    %cst_47 = arith.constant dense<0.000000e+00> : vector<1x96xf32>
    %217 = tpu.matmul %216, %39, %cst_47 {dimension_numbers = #tpu.dot_dimension_numbers<[1], [0], [0], [1], [0, 0, 1, 1], [], []>} : vector<1x32xbf16>, vector<32x96xbf16>, vector<1x96xf32> -> vector<1x96xf32>
    %218 = arith.addf %217, %40 : vector<1x96xf32>
    %219 = vector.extract_strided_slice %38 {offsets = [6, 0], sizes = [1, 32], strides = [1, 1]} : vector<8x96xf32> to vector<1x32xf32>
    %220 = vector.extract_strided_slice %218 {offsets = [0, 0], sizes = [1, 32], strides = [1, 1]} : vector<1x96xf32> to vector<1x32xf32>
    %221 = arith.addf %219, %220 : vector<1x32xf32>
    %222 = arith.negf %221 : vector<1x32xf32>
    %223 = math.exp %222 : vector<1x32xf32>
    %cst_48 = arith.constant 1.000000e+00 : f32
    %224 = vector.broadcast %cst_48 : f32 to vector<1x32xf32>
    %225 = arith.addf %224, %223 : vector<1x32xf32>
    %226 = arith.divf %224, %225 : vector<1x32xf32>
    %227 = vector.extract_strided_slice %38 {offsets = [6, 32], sizes = [1, 32], strides = [1, 1]} : vector<8x96xf32> to vector<1x32xf32>
    %228 = vector.extract_strided_slice %218 {offsets = [0, 32], sizes = [1, 32], strides = [1, 1]} : vector<1x96xf32> to vector<1x32xf32>
    %229 = arith.addf %227, %228 : vector<1x32xf32>
    %230 = arith.negf %229 : vector<1x32xf32>
    %231 = math.exp %230 : vector<1x32xf32>
    %cst_49 = arith.constant 1.000000e+00 : f32
    %232 = vector.broadcast %cst_49 : f32 to vector<1x32xf32>
    %233 = arith.addf %232, %231 : vector<1x32xf32>
    %234 = arith.divf %232, %233 : vector<1x32xf32>
    %235 = vector.extract_strided_slice %38 {offsets = [6, 64], sizes = [1, 32], strides = [1, 1]} : vector<8x96xf32> to vector<1x32xf32>
    %236 = vector.extract_strided_slice %218 {offsets = [0, 64], sizes = [1, 32], strides = [1, 1]} : vector<1x96xf32> to vector<1x32xf32>
    %237 = arith.mulf %226, %236 : vector<1x32xf32>
    %238 = arith.addf %235, %237 : vector<1x32xf32>
    %239 = math.tanh %238 : vector<1x32xf32>
    %cst_50 = arith.constant 1.000000e+00 : f32
    %240 = vector.broadcast %cst_50 : f32 to vector<1x32xf32>
    %241 = arith.subf %240, %234 : vector<1x32xf32>
    %242 = arith.mulf %241, %239 : vector<1x32xf32>
    %243 = arith.mulf %234, %215 : vector<1x32xf32>
    %244 = arith.addf %242, %243 : vector<1x32xf32>
    %245 = arith.truncf %244 : vector<1x32xf32> to vector<1x32xbf16>
    %cst_51 = arith.constant dense<0.000000e+00> : vector<1x96xf32>
    %246 = tpu.matmul %245, %39, %cst_51 {dimension_numbers = #tpu.dot_dimension_numbers<[1], [0], [0], [1], [0, 0, 1, 1], [], []>} : vector<1x32xbf16>, vector<32x96xbf16>, vector<1x96xf32> -> vector<1x96xf32>
    %247 = arith.addf %246, %40 : vector<1x96xf32>
    %248 = vector.extract_strided_slice %38 {offsets = [7, 0], sizes = [1, 32], strides = [1, 1]} : vector<8x96xf32> to vector<1x32xf32>
    %249 = vector.extract_strided_slice %247 {offsets = [0, 0], sizes = [1, 32], strides = [1, 1]} : vector<1x96xf32> to vector<1x32xf32>
    %250 = arith.addf %248, %249 : vector<1x32xf32>
    %251 = arith.negf %250 : vector<1x32xf32>
    %252 = math.exp %251 : vector<1x32xf32>
    %cst_52 = arith.constant 1.000000e+00 : f32
    %253 = vector.broadcast %cst_52 : f32 to vector<1x32xf32>
    %254 = arith.addf %253, %252 : vector<1x32xf32>
    %255 = arith.divf %253, %254 : vector<1x32xf32>
    %256 = vector.extract_strided_slice %38 {offsets = [7, 32], sizes = [1, 32], strides = [1, 1]} : vector<8x96xf32> to vector<1x32xf32>
    %257 = vector.extract_strided_slice %247 {offsets = [0, 32], sizes = [1, 32], strides = [1, 1]} : vector<1x96xf32> to vector<1x32xf32>
    %258 = arith.addf %256, %257 : vector<1x32xf32>
    %259 = arith.negf %258 : vector<1x32xf32>
    %260 = math.exp %259 : vector<1x32xf32>
    %cst_53 = arith.constant 1.000000e+00 : f32
    %261 = vector.broadcast %cst_53 : f32 to vector<1x32xf32>
    %262 = arith.addf %261, %260 : vector<1x32xf32>
    %263 = arith.divf %261, %262 : vector<1x32xf32>
    %264 = vector.extract_strided_slice %38 {offsets = [7, 64], sizes = [1, 32], strides = [1, 1]} : vector<8x96xf32> to vector<1x32xf32>
    %265 = vector.extract_strided_slice %247 {offsets = [0, 64], sizes = [1, 32], strides = [1, 1]} : vector<1x96xf32> to vector<1x32xf32>
    %266 = arith.mulf %255, %265 : vector<1x32xf32>
    %267 = arith.addf %264, %266 : vector<1x32xf32>
    %268 = math.tanh %267 : vector<1x32xf32>
    %cst_54 = arith.constant 1.000000e+00 : f32
    %269 = vector.broadcast %cst_54 : f32 to vector<1x32xf32>
    %270 = arith.subf %269, %263 : vector<1x32xf32>
    %271 = arith.mulf %270, %268 : vector<1x32xf32>
    %272 = arith.mulf %263, %244 : vector<1x32xf32>
    %273 = arith.addf %271, %272 : vector<1x32xf32>
    %c0_55 = arith.constant 0 : index
    %c0_56 = arith.constant 0 : index
    %274 = vector.load %arg5[%c0_55, %c0_56] : memref<1x32xf32, #tpu.memory_space<vmem>>, vector<1x32xf32>
    tpu.vector_store %arg5[%c0_55, %c0_56], %273 {strides = array<i32>} : memref<1x32xf32, #tpu.memory_space<vmem>>, vector<1x32xf32>,
    %275 = tpu.concatenate %70, %99, %128, %157, %186, %215, %244, %273 in 0 : vector<1x32xf32>, vector<1x32xf32>, vector<1x32xf32>, vector<1x32xf32>, vector<1x32xf32>, vector<1x32xf32>, vector<1x32xf32>, vector<1x32xf32> -> vector<8x32xf32>
    %276 = arith.truncf %275 : vector<8x32xf32> to vector<8x32xbf16>
    %c208 = arith.constant 208 : index
    %c0_57 = arith.constant 0 : index
    %277 = vector.load %arg2[%c208, %c0_57] : memref<256x128xbf16, #tpu.memory_space<vmem>>, vector<32x128xbf16>
    %cst_58 = arith.constant dense<0.000000e+00> : vector<8x128xf32>
    %278 = tpu.matmul %276, %277, %cst_58 {dimension_numbers = #tpu.dot_dimension_numbers<[1], [0], [0], [1], [0, 0, 1, 1], [], []>} : vector<8x32xbf16>, vector<32x128xbf16>, vector<8x128xf32> -> vector<8x128xf32>
    %c240 = arith.constant 240 : index
    %c0_59 = arith.constant 0 : index
    %279 = vector.load %arg2[%c240, %c0_59] : memref<256x128xbf16, #tpu.memory_space<vmem>>, vector<16x128xbf16>
    %cst_60 = arith.constant dense<0.000000e+00> : vector<8x128xf32>
    %280 = tpu.matmul %9, %279, %cst_60 {dimension_numbers = #tpu.dot_dimension_numbers<[1], [0], [0], [1], [0, 0, 1, 1], [], []>} : vector<8x16xbf16>, vector<16x128xbf16>, vector<8x128xf32> -> vector<8x128xf32>
    %281 = arith.addf %278, %280 : vector<8x128xf32>
    %c5 = arith.constant 5 : index
    %c0_61 = arith.constant 0 : index
    %282 = vector.load %arg3[%c5, %c0_61] : memref<6x128xf32, #tpu.memory_space<vmem>>, vector<1x128xf32>
    %283 = vector.broadcast %282 : vector<1x128xf32> to vector<8x128xf32>
    %284 = arith.addf %281, %283 : vector<8x128xf32>
    %cst_62 = arith.constant dense<0xFF800000> : vector<8xf32>
    %285 = vector.multi_reduction <maximumf>, %284, %cst_62 [1] : vector<8x128xf32> to vector<8xf32>
    %286 = vector.shape_cast %285 : vector<8xf32> to vector<8x1xf32>
    %287 = vector.broadcast %286 : vector<8x1xf32> to vector<8x128xf32>
    %288 = arith.subf %284, %287 : vector<8x128xf32>
    %289 = math.exp %288 : vector<8x128xf32>
    %cst_63 = arith.constant dense<0.000000e+00> : vector<8xf32>
    %290 = vector.multi_reduction <add>, %289, %cst_63 [1] : vector<8x128xf32> to vector<8xf32>
    %291 = vector.shape_cast %290 : vector<8xf32> to vector<8x1xf32>
    %292 = math.log %291 : vector<8x1xf32>
    %293 = vector.broadcast %292 : vector<8x1xf32> to vector<8x128xf32>
    %294 = arith.subf %288, %293 : vector<8x128xf32>
    %c0_64 = arith.constant 0 : index
    %c0_65 = arith.constant 0 : index
    %295 = vector.load %arg4[%c0_64, %c0_65] : memref<8x128xf32, #tpu.memory_space<vmem>>, vector<8x128xf32>
    tpu.vector_store %arg4[%c0_64, %c0_65], %294 {strides = array<i32>} : memref<8x128xf32, #tpu.memory_space<vmem>>, vector<8x128xf32>,
    return
  }
}

</mosaic_0001>

<llo_original>
// kernel: tpu_custom_call.1
$region0: #{tpu_custom_call.1}
  #allocation0 [shape = 'u32[]', space=smem, size = 0x4, offset = 0x4, fixed_abs, tag = 'smem constant byte address 0x4 - core index']
  #allocation1 [shape = 'u32[144,128]{1,0:T(1,128)}', space=vmem, size = 0x12000, scoped, tag = 'internal scratch']
  %s0 = inlined_call_operand.vmem [shape: s32[8,1], index: 0, kind: input, shape index: {}]
  %s1 = inlined_call_operand.vmem [shape: f32[1,32], index: 1, kind: input, shape index: {}]
  %s2 = inlined_call_operand.hbm [shape: bf16[256,128], index: 2, kind: input, shape index: {}]
  %s3 = inlined_call_operand.vmem [shape: f32[6,128], index: 3, kind: input, shape index: {}]
  %s4 = inlined_call_operand.hbm [shape: f32[8,128], index: 4, kind: output, shape index: {0}]
  %s5 = inlined_call_operand.hbm [shape: f32[1,32], index: 5, kind: output, shape index: {1}]
  %6 = xla_tuple %s4, %s5
  %s7 = sld [smem:[#allocation0]]
  $region38: #{tpu_custom_call.1} parent=0
    _
  %s9 = ssub.s32 1, %s7
  %s10 = scalar_select 0, %s9, %s7
  $region1: #{tpu_custom_call.1} parent=0
    #allocation2 [shape = 'u8[65536]{0}', space=vmem, size = 0x10000, scoped, tag = 'input window, operand 2, single buffered']
    #allocation3 [shape = 's32[1]{0}', space=sflag, size = 0x4, scoped, tag = 'scoped memory for tpu_custom_call.1']
    #allocation4 [shape = 's32[1]{0}', space=sflag, size = 0x4, scoped, tag = 'scoped memory for tpu_custom_call.1']
    #allocation5 [shape = 'u8[4096]{0}', space=vmem, size = 0x1000, scoped, tag = 'output window, operand 0, single buffered']
    #allocation6 [shape = 'u8[512]{0}', space=vmem, size = 0x400, scoped, tag = 'output window, operand 1, single buffered']
    #allocation7 [shape = 's32[1]{0}', space=sflag, size = 0x4, scoped, tag = 'scoped memory for tpu_custom_call.1']
    %11 = vsyncpa [#allocation3], 0
    %12 = vsyncpa [#allocation4], 0
    %13 = vsyncpa [#allocation7], 0
    // Predicated region
    $region2: #{tpu_custom_call.1} parent=1 // pred_check
      _
    $region3: #{tpu_custom_call.1} parent=1 // pred_check_branch
      %15 = sbr.rel (0) target = $region5
    $region4: #{tpu_custom_call.1} parent=1 // pred_region
      _
    $region5: #{tpu_custom_call.1} parent=1 // pred_fallthru
      _
    // Predicated region
    $region6: #{tpu_custom_call.1} parent=1 // pred_check
      _
    $region7: #{tpu_custom_call.1} parent=1 // pred_check_branch
      %17 = sbr.rel (0) target = $region9
    $region8: #{tpu_custom_call.1} parent=1 // pred_region
      _
    $region9: #{tpu_custom_call.1} parent=1 // pred_fallthru
      _
    // Predicated region
    $region10: #{tpu_custom_call.1} parent=1 // pred_check
      _
    $region11: #{tpu_custom_call.1} parent=1 // pred_check_branch
      %19 = sbr.rel (0) target = $region13
    $region12: #{tpu_custom_call.1} parent=1 // pred_region
      %s21 = ssub.s32 2048, 2048
      %22 = vsyncadd [#allocation3], %s21
      %s23 = sshll.u32 [#allocation2], 4
      %s24 = int_to_ptr.vmem [resolvable:$true] %s23
      %29 = dma.hbm_to_vmem [thread:$0]  %s2, 2048, %s24, [#allocation3], 64, 64, 4
    $region13: #{tpu_custom_call.1} parent=1 // pred_fallthru
      _
    // Predicated region
    $region14: #{tpu_custom_call.1} parent=1 // pred_check
      _
    $region15: #{tpu_custom_call.1} parent=1 // pred_check_branch
      %31 = sbr.rel (0) target = $region17
    $region16: #{tpu_custom_call.1} parent=1 // pred_region
      _
    $region17: #{tpu_custom_call.1} parent=1 // pred_fallthru
      _
    // Predicated region
    $region18: #{tpu_custom_call.1} parent=1 // pred_check
      _
    $region19: #{tpu_custom_call.1} parent=1 // pred_check_branch
      %33 = sbr.rel (0) target = $region21
    $region20: #{tpu_custom_call.1} parent=1 // pred_region
      %34 = dma.done [#allocation3], 2048
    $region21: #{tpu_custom_call.1} parent=1 // pred_fallthru
      _
    %v36 = vld [vmem:[%s0] sm:$0xff]
    %v37 = vlaneseq
    %v38 = vand.u32 %v37, 127
    %39 = vset.pattern.permute.xlu0 0
    %40 = vperm.xlu0 %39, %v36
    %v41 = vpop.permute.xlu0 %40
    %vm42 = vcmp.eq.s32.totalorder %v38, %v41
    %v43 = vsel %vm42, 1, 0
    %v44 = vcvt.s32.f32 %v43
    %v45 = vpack.c.bf16 %v44, %v44
    %v46 = vld [vmem:[#allocation2] sm:$0xf]
    %v47 = vld [vmem:[#allocation2 + $0x4] sm:$0xf]
    %v48 = vld [vmem:[#allocation2 + $0x8] sm:$0xf]
    %v49 = vld [vmem:[#allocation2 + $0xc] sm:$0xf]
    %v50 = vld [vmem:[#allocation2 + $0x10] sm:$0xf]
    %v51 = vld [vmem:[#allocation2 + $0x14] sm:$0xf]
    %v52 = vld [vmem:[#allocation2 + $0x18] sm:$0xf]
    %v53 = vld [vmem:[#allocation2 + $0x1c] sm:$0xf]
    %v62 = vunpack.c.l.b16 %v46
    %v63 = vunpack.c.l.b16 %v47
    %v64 = vunpack.c.l.b16 %v48
    %v65 = vunpack.c.l.b16 %v49
    %v66 = vunpack.c.l.b16 %v50
    %v67 = vunpack.c.l.b16 %v51
    %v68 = vunpack.c.l.b16 %v52
    %v69 = vunpack.c.l.b16 %v53
    %v70 = vpack.c.b16 %v63, %v62
    %v71 = vpack.c.b16 %v65, %v64
    %v72 = vpack.c.b16 %v67, %v66
    %v73 = vpack.c.b16 %v69, %v68
    %vm78 = vcmask 523264
    %v80 = vsel %vm78, %v45, 0
    %82 = vmatprep.subr.bf16.mxu0 0
    %83 = vmatpush1.bf16.msra.mxu0 %v70
    %84 = vmatprep.subr.bf16.mxu0 0
    %85 = vmatpush1.bf16.msra.mxu0 %v71
    %86 = vmatprep.subr.bf16.mxu0 0
    %87 = vmatpush1.bf16.msra.mxu0 %v72
    %88 = vmatprep.subr.bf16.mxu0 0
    %89 = vmatpush1.bf16.msra.mxu0 %v73
    %90 = vmatprep.subr.bf16.mxu0 0
    %91 = vmatpush1.bf16.msra.mxu0 0
    %92 = vmatprep.subr.bf16.mxu0 0
    %93 = vmatpush1.bf16.msra.mxu0 0
    %94 = vmatprep.subr.bf16.mxu0 0
    %95 = vmatpush1.bf16.msra.mxu0 0
    %96 = vmatprep.subr.bf16.mxu0 0
    %97 = vmatpush1.bf16.msra.mxu0 0
    %98 = vmatprep.subr.bf16.mxu0 0
    %99 = vmatpush1.bf16.msra.mxu0 0
    %100 = vmatprep.subr.bf16.mxu0 0
    %101 = vmatpush1.bf16.msra.mxu0 0
    %102 = vmatprep.subr.bf16.mxu0 0
    %103 = vmatpush1.bf16.msra.mxu0 0
    %104 = vmatprep.subr.bf16.mxu0 0
    %105 = vmatpush1.bf16.msra.mxu0 0
    %106 = vmatprep.subr.bf16.mxu0 0
    %107 = vmatpush1.bf16.msra.mxu0 0
    %108 = vmatprep.subr.bf16.mxu0 0
    %109 = vmatpush1.bf16.msra.mxu0 0
    %110 = vmatprep.subr.bf16.mxu0 0
    %111 = vmatpush1.bf16.msra.mxu0 0
    %112 = vmatprep.subr.bf16.mxu0 0
    %113 = vmatpush1.bf16.msra.mxu0 0
    %114 = vmatprep.mubr.bf16.mxu0 0
    %115 = vmatmul.mubr.bf16.gmra.mrb[0].mxu0 %v80
    %v116 = vpop.f32.mrb[0].mxu0
    %v117 = vadd.f32 0.0, %v116
    %v118 = vpop.f32.mrb[0].mxu0
    %v119 = vpop.f32.mrb[0].mxu0
    %v120 = vpop.f32.mrb[0].mxu0
    %121 = vdwg.mxu0
    %v122 = vpack.c.bf16 %v117, %v117
    %v123 = vld [vmem:[#allocation2 + $0x20] sm:$0xf]
    %v124 = vld [vmem:[#allocation2 + $0x24] sm:$0xf]
    %v125 = vld [vmem:[%s3] sm:$0x1]
    %v126 = vlaneseq
    %v127 = vshrl.u32 %v126, 7
    %v128 = vsub.s32 0, %v127
    %v129 = vrot.slane %v125, %v128
    %v132 = vunpack.c.l.b16 %v123
    %v133 = vunpack.c.l.b16 %v124
    %v134 = vpack.c.b16 %v133, %v132
    %vm136 = vcmask 130048
    %v138 = vsel %vm136, %v122, 0
    %140 = vmatprep.subr.bf16.mxu0 0
    %141 = vmatpush1.bf16.msra.mxu0 %v134
    %142 = vmatprep.subr.bf16.mxu0 0
    %143 = vmatpush1.bf16.msra.mxu0 0
    %144 = vmatprep.subr.bf16.mxu0 0
    %145 = vmatpush1.bf16.msra.mxu0 0
    %146 = vmatprep.subr.bf16.mxu0 0
    %147 = vmatpush1.bf16.msra.mxu0 0
    %148 = vmatprep.subr.bf16.mxu0 0
    %149 = vmatpush1.bf16.msra.mxu0 0
    %150 = vmatprep.subr.bf16.mxu0 0
    %151 = vmatpush1.bf16.msra.mxu0 0
    %152 = vmatprep.subr.bf16.mxu0 0
    %153 = vmatpush1.bf16.msra.mxu0 0
    %154 = vmatprep.subr.bf16.mxu0 0
    %155 = vmatpush1.bf16.msra.mxu0 0
    %156 = vmatprep.subr.bf16.mxu0 0
    %157 = vmatpush1.bf16.msra.mxu0 0
    %158 = vmatprep.subr.bf16.mxu0 0
    %159 = vmatpush1.bf16.msra.mxu0 0
    %160 = vmatprep.subr.bf16.mxu0 0
    %161 = vmatpush1.bf16.msra.mxu0 0
    %162 = vmatprep.subr.bf16.mxu0 0
    %163 = vmatpush1.bf16.msra.mxu0 0
    %164 = vmatprep.subr.bf16.mxu0 0
    %165 = vmatpush1.bf16.msra.mxu0 0
    %166 = vmatprep.subr.bf16.mxu0 0
    %167 = vmatpush1.bf16.msra.mxu0 0
    %168 = vmatprep.subr.bf16.mxu0 0
    %169 = vmatpush1.bf16.msra.mxu0 0
    %170 = vmatprep.subr.bf16.mxu0 0
    %171 = vmatpush1.bf16.msra.mxu0 0
    %172 = vmatprep.mubr.bf16.mxu0 0
    %173 = vmatmul.mubr.bf16.gmra.mrb[0].mxu0 %v138
    %v174 = vpop.f32.mrb[0].mxu0
    %v175 = vadd.f32 %v129, %v174
    %v176 = vpop.f32.mrb[0].mxu0
    %v177 = vpop.f32.mrb[0].mxu0
    %v178 = vpop.f32.mrb[0].mxu0
    %179 = vdwg.mxu0
    %v180 = vmax.f32 %v175, 0.0
    %v181 = vpack.c.bf16 %v180, %v180
    %v182 = vld [vmem:[#allocation2 + $0x28] sm:$0xf]
    %v183 = vld [vmem:[#allocation2 + $0x2c] sm:$0xf]
    %v184 = vld [vmem:[#allocation2 + $0x30] sm:$0xf]
    %v185 = vld [vmem:[#allocation2 + $0x34] sm:$0xf]
    %v186 = vld [vmem:[%s3 + $0x1] sm:$0x1]
    %v187 = vlaneseq
    %v188 = vshrl.u32 %v187, 7
    %v189 = vsub.s32 0, %v188
    %v190 = vrot.slane %v186, %v189
    %v195 = vunpack.c.l.b16 %v182
    %v196 = vunpack.c.l.b16 %v183
    %v197 = vunpack.c.l.b16 %v184
    %v198 = vunpack.c.l.b16 %v185
    %v199 = vpack.c.b16 %v196, %v195
    %v200 = vpack.c.b16 %v198, %v197
    %vm203 = vcmask 261120
    %v205 = vsel %vm203, %v181, 0
    %207 = vmatprep.subr.bf16.mxu0 0
    %208 = vmatpush1.bf16.msra.mxu0 %v199
    %209 = vmatprep.subr.bf16.mxu0 0
    %210 = vmatpush1.bf16.msra.mxu0 %v200
    %211 = vmatprep.subr.bf16.mxu0 0
    %212 = vmatpush1.bf16.msra.mxu0 0
    %213 = vmatprep.subr.bf16.mxu0 0
    %214 = vmatpush1.bf16.msra.mxu0 0
    %215 = vmatprep.subr.bf16.mxu0 0
    %216 = vmatpush1.bf16.msra.mxu0 0
    %217 = vmatprep.subr.bf16.mxu0 0
    %218 = vmatpush1.bf16.msra.mxu0 0
    %219 = vmatprep.subr.bf16.mxu0 0
    %220 = vmatpush1.bf16.msra.mxu0 0
    %221 = vmatprep.subr.bf16.mxu0 0
    %222 = vmatpush1.bf16.msra.mxu0 0
    %223 = vmatprep.subr.bf16.mxu0 0
    %224 = vmatpush1.bf16.msra.mxu0 0
    %225 = vmatprep.subr.bf16.mxu0 0
    %226 = vmatpush1.bf16.msra.mxu0 0
    %227 = vmatprep.subr.bf16.mxu0 0
    %228 = vmatpush1.bf16.msra.mxu0 0
    %229 = vmatprep.subr.bf16.mxu0 0
    %230 = vmatpush1.bf16.msra.mxu0 0
    %231 = vmatprep.subr.bf16.mxu0 0
    %232 = vmatpush1.bf16.msra.mxu0 0
    %233 = vmatprep.subr.bf16.mxu0 0
    %234 = vmatpush1.bf16.msra.mxu0 0
    %235 = vmatprep.subr.bf16.mxu0 0
    %236 = vmatpush1.bf16.msra.mxu0 0
    %237 = vmatprep.subr.bf16.mxu0 0
    %238 = vmatpush1.bf16.msra.mxu0 0
    %239 = vmatprep.mubr.bf16.mxu0 0
    %240 = vmatmul.mubr.bf16.gmra.mrb[0].mxu0 %v205
    %v241 = vpop.f32.mrb[0].mxu0
    %v242 = vadd.f32 %v190, %v241
    %v243 = vpop.f32.mrb[0].mxu0
    %v244 = vpop.f32.mrb[0].mxu0
    %v245 = vpop.f32.mrb[0].mxu0
    %246 = vdwg.mxu0
    %v247 = vmax.f32 %v242, 0.0
    %v248 = vpack.c.bf16 %v247, %v247
    %v249 = vld [vmem:[#allocation2 + $0x38] sm:$0xf]
    %v250 = vld [vmem:[#allocation2 + $0x3c] sm:$0xf]
    %v251 = vld [vmem:[#allocation2 + $0x40] sm:$0xf]
    %v252 = vld [vmem:[#allocation2 + $0x44] sm:$0xf]
    %v253 = vld [vmem:[%s3 + $0x2] sm:$0x1]
    %v254 = vlaneseq
    %v255 = vshrl.u32 %v254, 7
    %v256 = vsub.s32 0, %v255
    %v257 = vrot.slane %v253, %v256
    %v262 = vunpack.c.l.b16 %v249
    %v263 = vunpack.c.l.b16 %v250
    %v264 = vunpack.c.l.b16 %v251
    %v265 = vunpack.c.l.b16 %v252
    %v266 = vpack.c.b16 %v263, %v262
    %v267 = vpack.c.b16 %v265, %v264
    %v271 = vsel %vm203, %v248, 0
    %273 = vmatprep.subr.bf16.mxu0 0
    %274 = vmatpush1.bf16.msra.mxu0 %v266
    %275 = vmatprep.subr.bf16.mxu0 0
    %276 = vmatpush1.bf16.msra.mxu0 %v267
    %277 = vmatprep.subr.bf16.mxu0 0
    %278 = vmatpush1.bf16.msra.mxu0 0
    %279 = vmatprep.subr.bf16.mxu0 0
    %280 = vmatpush1.bf16.msra.mxu0 0
    %281 = vmatprep.subr.bf16.mxu0 0
    %282 = vmatpush1.bf16.msra.mxu0 0
    %283 = vmatprep.subr.bf16.mxu0 0
    %284 = vmatpush1.bf16.msra.mxu0 0
    %285 = vmatprep.subr.bf16.mxu0 0
    %286 = vmatpush1.bf16.msra.mxu0 0
    %287 = vmatprep.subr.bf16.mxu0 0
    %288 = vmatpush1.bf16.msra.mxu0 0
    %289 = vmatprep.subr.bf16.mxu0 0
    %290 = vmatpush1.bf16.msra.mxu0 0
    %291 = vmatprep.subr.bf16.mxu0 0
    %292 = vmatpush1.bf16.msra.mxu0 0
    %293 = vmatprep.subr.bf16.mxu0 0
    %294 = vmatpush1.bf16.msra.mxu0 0
    %295 = vmatprep.subr.bf16.mxu0 0
    %296 = vmatpush1.bf16.msra.mxu0 0
    %297 = vmatprep.subr.bf16.mxu0 0
    %298 = vmatpush1.bf16.msra.mxu0 0
    %299 = vmatprep.subr.bf16.mxu0 0
    %300 = vmatpush1.bf16.msra.mxu0 0
    %301 = vmatprep.subr.bf16.mxu0 0
    %302 = vmatpush1.bf16.msra.mxu0 0
    %303 = vmatprep.subr.bf16.mxu0 0
    %304 = vmatpush1.bf16.msra.mxu0 0
    %305 = vmatprep.mubr.bf16.mxu0 0
    %306 = vmatmul.mubr.bf16.gmra.mrb[0].mxu0 %v271
    %v307 = vpop.f32.mrb[0].mxu0
    %v308 = vadd.f32 %v257, %v307
    %v309 = vpop.f32.mrb[0].mxu0
    %v310 = vpop.f32.mrb[0].mxu0
    %v311 = vpop.f32.mrb[0].mxu0
    %312 = vdwg.mxu0
    %v313 = vmax.f32 %v308, 0.0
    %v314 = vpack.c.bf16 %v313, %v313
    %v315 = vld [vmem:[#allocation2 + $0x48] sm:$0xf]
    %v316 = vld [vmem:[#allocation2 + $0x4c] sm:$0xf]
    %v317 = vld [vmem:[#allocation2 + $0x50] sm:$0xf]
    %v318 = vld [vmem:[#allocation2 + $0x54] sm:$0xf]
    %v319 = vld [vmem:[%s3 + $0x3] sm:$0x1]
    %v320 = vlaneseq
    %v321 = vshrl.u32 %v320, 7
    %v322 = vsub.s32 0, %v321
    %v323 = vrot.slane %v319, %v322
    %v328 = vunpack.c.l.b16 %v315
    %v329 = vunpack.c.l.b16 %v316
    %v330 = vunpack.c.l.b16 %v317
    %v331 = vunpack.c.l.b16 %v318
    %v332 = vpack.c.b16 %v329, %v328
    %v333 = vpack.c.b16 %v331, %v330
    %v337 = vsel %vm203, %v314, 0
    %339 = vmatprep.subr.bf16.mxu0 0
    %340 = vmatpush1.bf16.msra.mxu0 %v332
    %341 = vmatprep.subr.bf16.mxu0 0
    %342 = vmatpush1.bf16.msra.mxu0 %v333
    %343 = vmatprep.subr.bf16.mxu0 0
    %344 = vmatpush1.bf16.msra.mxu0 0
    %345 = vmatprep.subr.bf16.mxu0 0
    %346 = vmatpush1.bf16.msra.mxu0 0
    %347 = vmatprep.subr.bf16.mxu0 0
    %348 = vmatpush1.bf16.msra.mxu0 0
    %349 = vmatprep.subr.bf16.mxu0 0
    %350 = vmatpush1.bf16.msra.mxu0 0
    %351 = vmatprep.subr.bf16.mxu0 0
    %352 = vmatpush1.bf16.msra.mxu0 0
    %353 = vmatprep.subr.bf16.mxu0 0
    %354 = vmatpush1.bf16.msra.mxu0 0
    %355 = vmatprep.subr.bf16.mxu0 0
    %356 = vmatpush1.bf16.msra.mxu0 0
    %357 = vmatprep.subr.bf16.mxu0 0
    %358 = vmatpush1.bf16.msra.mxu0 0
    %359 = vmatprep.subr.bf16.mxu0 0
    %360 = vmatpush1.bf16.msra.mxu0 0
    %361 = vmatprep.subr.bf16.mxu0 0
    %362 = vmatpush1.bf16.msra.mxu0 0
    %363 = vmatprep.subr.bf16.mxu0 0
    %364 = vmatpush1.bf16.msra.mxu0 0
    %365 = vmatprep.subr.bf16.mxu0 0
    %366 = vmatpush1.bf16.msra.mxu0 0
    %367 = vmatprep.subr.bf16.mxu0 0
    %368 = vmatpush1.bf16.msra.mxu0 0
    %369 = vmatprep.subr.bf16.mxu0 0
    %370 = vmatpush1.bf16.msra.mxu0 0
    %371 = vmatprep.mubr.bf16.mxu0 0
    %372 = vmatmul.mubr.bf16.gmra.mrb[0].mxu0 %v337
    %v373 = vpop.f32.mrb[0].mxu0
    %v374 = vadd.f32 %v323, %v373
    %v375 = vpop.f32.mrb[0].mxu0
    %v376 = vpop.f32.mrb[0].mxu0
    %v377 = vpop.f32.mrb[0].mxu0
    %378 = vdwg.mxu0
    %v379 = vld [vmem:[#allocation2 + $0x58] sm:$0xf]
    %v380 = vld [vmem:[#allocation2 + $0x5c] sm:$0xf]
    %v381 = vld [vmem:[#allocation2 + $0x60] sm:$0xf]
    %v382 = vld [vmem:[#allocation2 + $0x64] sm:$0xf]
    %v383 = vld [vmem:[%s3 + $0x4] sm:$0x1]
    %v384 = vld [vmem:[%s1] sm:$0x1]
    %v385 = vpack.c.bf16 %v384, %v384
    %v390 = vunpack.c.l.b16 %v379
    %v391 = vunpack.c.l.b16 %v380
    %v392 = vunpack.c.l.b16 %v381
    %v393 = vunpack.c.l.b16 %v382
    %v394 = vpack.c.b16 %v391, %v390
    %v395 = vpack.c.b16 %v393, %v392
    %v399 = vsel %vm203, %v385, 0
    %401 = vmatprep.subr.bf16.mxu0 0
    %402 = vmatpush1.bf16.msra.mxu0 %v394
    %403 = vmatprep.subr.bf16.mxu0 0
    %404 = vmatpush1.bf16.msra.mxu0 %v395
    %405 = vmatprep.subr.bf16.mxu0 0
    %406 = vmatpush1.bf16.msra.mxu0 0
    %407 = vmatprep.subr.bf16.mxu0 0
    %408 = vmatpush1.bf16.msra.mxu0 0
    %409 = vmatprep.subr.bf16.mxu0 0
    %410 = vmatpush1.bf16.msra.mxu0 0
    %411 = vmatprep.subr.bf16.mxu0 0
    %412 = vmatpush1.bf16.msra.mxu0 0
    %413 = vmatprep.subr.bf16.mxu0 0
    %414 = vmatpush1.bf16.msra.mxu0 0
    %415 = vmatprep.subr.bf16.mxu0 0
    %416 = vmatpush1.bf16.msra.mxu0 0
    %417 = vmatprep.subr.bf16.mxu0 0
    %418 = vmatpush1.bf16.msra.mxu0 0
    %419 = vmatprep.subr.bf16.mxu0 0
    %420 = vmatpush1.bf16.msra.mxu0 0
    %421 = vmatprep.subr.bf16.mxu0 0
    %422 = vmatpush1.bf16.msra.mxu0 0
    %423 = vmatprep.subr.bf16.mxu0 0
    %424 = vmatpush1.bf16.msra.mxu0 0
    %425 = vmatprep.subr.bf16.mxu0 0
    %426 = vmatpush1.bf16.msra.mxu0 0
    %427 = vmatprep.subr.bf16.mxu0 0
    %428 = vmatpush1.bf16.msra.mxu0 0
    %429 = vmatprep.subr.bf16.mxu0 0
    %430 = vmatpush1.bf16.msra.mxu0 0
    %431 = vmatprep.subr.bf16.mxu0 0
    %432 = vmatpush1.bf16.msra.mxu0 0
    %433 = vmatprep.mubr.bf16.mxu0 0
    %434 = vmatmul.mubr.bf16.gmra.mrb[0].mxu0 %v399
    %v435 = vpop.f32.mrb[0].mxu0
    %v436 = vadd.f32 %v383, %v435
    %v437 = vpop.f32.mrb[0].mxu0
    %v438 = vpop.f32.mrb[0].mxu0
    %v439 = vpop.f32.mrb[0].mxu0
    %440 = vdwg.mxu0
    %v441 = vadd.f32 %v374, %v436
    %v442 = vxor.u32 %v441, 2147483648
    %v443 = vmul.f32 %v442, 1.442695
    %v444 = vpow.pop %v443
    %v445 = vadd.f32 %v444, 1.0
    %v446 = vrcp.pop %v445
    %v447 = vmul.f32 1.0, %v446
    %449 = vrot.lane.b32.xlu0 %v436, 64
    %v450 = vpop.permute.xlu0 %449
    %v452 = vmul.f32 %v447, %v450
    %454 = vrot.lane.b32.xlu0 %v452, 64
    %v455 = vpop.permute.xlu0 %454
    %v457 = vadd.f32 %v374, %v455
    %v458 = vtanh.pop %v457
    %v459 = vsub.f32 1.0, %v447
    %461 = vrot.lane.b32.xlu0 %v458, 96
    %v462 = vpop.permute.xlu0 %461
    %v464 = vmul.f32 %v459, %v462
    %v466 = vlaneseq
    %v467 = vshrl.u32 %v466, 7
    %v468 = vsub.s32 0, %v467
    %v469 = vrot.slane %v384, %v468
    %470 = vrot.lane.b32.xlu0 %v469, 32
    %v471 = vpop.permute.xlu0 %470
    %v473 = vmul.f32 %v447, %v471
    %v474 = vadd.f32 %v464, %v473
    %v475 = vpack.c.bf16 %v474, %v474
    %477 = vrot.lane.b32.xlu0 %v475, 96
    %v478 = vpop.permute.xlu0 %477
    %v480 = vsel %vm203, %v478, 0
    %482 = vmatprep.subr.bf16.mxu0 0
    %483 = vmatpush1.bf16.msra.mxu0 %v394
    %484 = vmatprep.subr.bf16.mxu0 0
    %485 = vmatpush1.bf16.msra.mxu0 %v395
    %486 = vmatprep.subr.bf16.mxu0 0
    %487 = vmatpush1.bf16.msra.mxu0 0
    %488 = vmatprep.subr.bf16.mxu0 0
    %489 = vmatpush1.bf16.msra.mxu0 0
    %490 = vmatprep.subr.bf16.mxu0 0
    %491 = vmatpush1.bf16.msra.mxu0 0
    %492 = vmatprep.subr.bf16.mxu0 0
    %493 = vmatpush1.bf16.msra.mxu0 0
    %494 = vmatprep.subr.bf16.mxu0 0
    %495 = vmatpush1.bf16.msra.mxu0 0
    %496 = vmatprep.subr.bf16.mxu0 0
    %497 = vmatpush1.bf16.msra.mxu0 0
    %498 = vmatprep.subr.bf16.mxu0 0
    %499 = vmatpush1.bf16.msra.mxu0 0
    %500 = vmatprep.subr.bf16.mxu0 0
    %501 = vmatpush1.bf16.msra.mxu0 0
    %502 = vmatprep.subr.bf16.mxu0 0
    %503 = vmatpush1.bf16.msra.mxu0 0
    %504 = vmatprep.subr.bf16.mxu0 0
    %505 = vmatpush1.bf16.msra.mxu0 0
    %506 = vmatprep.subr.bf16.mxu0 0
    %507 = vmatpush1.bf16.msra.mxu0 0
    %508 = vmatprep.subr.bf16.mxu0 0
    %509 = vmatpush1.bf16.msra.mxu0 0
    %510 = vmatprep.subr.bf16.mxu0 0
    %511 = vmatpush1.bf16.msra.mxu0 0
    %512 = vmatprep.subr.bf16.mxu0 0
    %513 = vmatpush1.bf16.msra.mxu0 0
    %514 = vmatprep.mubr.bf16.mxu0 0
    %515 = vmatmul.mubr.bf16.gmra.mrb[0].mxu0 %v480
    %v516 = vpop.f32.mrb[0].mxu0
    %v517 = vadd.f32 %v383, %v516
    %v518 = vpop.f32.mrb[0].mxu0
    %v519 = vpop.f32.mrb[0].mxu0
    %v520 = vpop.f32.mrb[0].mxu0
    %521 = vdwg.mxu0
    %v523 = vrot.slane %v517, 7
    %v525 = vadd.f32 %v374, %v523
    %v526 = vxor.u32 %v525, 2147483648
    %v527 = vmul.f32 %v526, 1.442695
    %v528 = vpow.pop %v527
    %v529 = vadd.f32 %v528, 1.0
    %v530 = vrcp.pop %v529
    %v531 = vmul.f32 1.0, %v530
    %532 = vrot.lane.b32.xlu0 %v523, 64
    %v533 = vpop.permute.xlu0 %532
    %v535 = vmul.f32 %v531, %v533
    %537 = vrot.lane.b32.xlu0 %v535, 64
    %v538 = vpop.permute.xlu0 %537
    %v540 = vadd.f32 %v374, %v538
    %v541 = vtanh.pop %v540
    %v542 = vsub.f32 1.0, %v531
    %544 = vrot.lane.b32.xlu0 %v541, 96
    %v545 = vpop.permute.xlu0 %544
    %v547 = vmul.f32 %v542, %v545
    %v549 = vrot.slane %v474, 7
    %v551 = vmul.f32 %v531, %v549
    %v552 = vadd.f32 %v547, %v551
    %v553 = vpack.c.bf16 %v552, %v552
    %v555 = vshrl.u32 %v553, 16
    %557 = vrot.lane.b32.xlu0 %v555, 96
    %v558 = vpop.permute.xlu0 %557
    %v560 = vsel %vm203, %v558, 0
    %562 = vmatprep.subr.bf16.mxu0 0
    %563 = vmatpush1.bf16.msra.mxu0 %v394
    %564 = vmatprep.subr.bf16.mxu0 0
    %565 = vmatpush1.bf16.msra.mxu0 %v395
    %566 = vmatprep.subr.bf16.mxu0 0
    %567 = vmatpush1.bf16.msra.mxu0 0
    %568 = vmatprep.subr.bf16.mxu0 0
    %569 = vmatpush1.bf16.msra.mxu0 0
    %570 = vmatprep.subr.bf16.mxu0 0
    %571 = vmatpush1.bf16.msra.mxu0 0
    %572 = vmatprep.subr.bf16.mxu0 0
    %573 = vmatpush1.bf16.msra.mxu0 0
    %574 = vmatprep.subr.bf16.mxu0 0
    %575 = vmatpush1.bf16.msra.mxu0 0
    %576 = vmatprep.subr.bf16.mxu0 0
    %577 = vmatpush1.bf16.msra.mxu0 0
    %578 = vmatprep.subr.bf16.mxu0 0
    %579 = vmatpush1.bf16.msra.mxu0 0
    %580 = vmatprep.subr.bf16.mxu0 0
    %581 = vmatpush1.bf16.msra.mxu0 0
    %582 = vmatprep.subr.bf16.mxu0 0
    %583 = vmatpush1.bf16.msra.mxu0 0
    %584 = vmatprep.subr.bf16.mxu0 0
    %585 = vmatpush1.bf16.msra.mxu0 0
    %586 = vmatprep.subr.bf16.mxu0 0
    %587 = vmatpush1.bf16.msra.mxu0 0
    %588 = vmatprep.subr.bf16.mxu0 0
    %589 = vmatpush1.bf16.msra.mxu0 0
    %590 = vmatprep.subr.bf16.mxu0 0
    %591 = vmatpush1.bf16.msra.mxu0 0
    %592 = vmatprep.subr.bf16.mxu0 0
    %593 = vmatpush1.bf16.msra.mxu0 0
    %594 = vmatprep.mubr.bf16.mxu0 0
    %595 = vmatmul.mubr.bf16.gmra.mrb[0].mxu0 %v560
    %v596 = vpop.f32.mrb[0].mxu0
    %v597 = vadd.f32 %v383, %v596
    %v598 = vpop.f32.mrb[0].mxu0
    %v599 = vpop.f32.mrb[0].mxu0
    %v600 = vpop.f32.mrb[0].mxu0
    %601 = vdwg.mxu0
    %v603 = vrot.slane %v597, 6
    %v605 = vadd.f32 %v374, %v603
    %v606 = vxor.u32 %v605, 2147483648
    %v607 = vmul.f32 %v606, 1.442695
    %v608 = vpow.pop %v607
    %v609 = vadd.f32 %v608, 1.0
    %v610 = vrcp.pop %v609
    %v611 = vmul.f32 1.0, %v610
    %612 = vrot.lane.b32.xlu0 %v603, 64
    %v613 = vpop.permute.xlu0 %612
    %v615 = vmul.f32 %v611, %v613
    %617 = vrot.lane.b32.xlu0 %v615, 64
    %v618 = vpop.permute.xlu0 %617
    %v620 = vadd.f32 %v374, %v618
    %v621 = vtanh.pop %v620
    %v622 = vsub.f32 1.0, %v611
    %624 = vrot.lane.b32.xlu0 %v621, 96
    %v625 = vpop.permute.xlu0 %624
    %v627 = vmul.f32 %v622, %v625
    %v629 = vrot.slane %v552, 7
    %v631 = vmul.f32 %v611, %v629
    %v632 = vadd.f32 %v627, %v631
    %v633 = vpack.c.bf16 %v632, %v632
    %v635 = vrot.slane %v633, 1
    %636 = vrot.lane.b32.xlu0 %v635, 96
    %v637 = vpop.permute.xlu0 %636
    %v639 = vsel %vm203, %v637, 0
    %641 = vmatprep.subr.bf16.mxu0 0
    %642 = vmatpush1.bf16.msra.mxu0 %v394
    %643 = vmatprep.subr.bf16.mxu0 0
    %644 = vmatpush1.bf16.msra.mxu0 %v395
    %645 = vmatprep.subr.bf16.mxu0 0
    %646 = vmatpush1.bf16.msra.mxu0 0
    %647 = vmatprep.subr.bf16.mxu0 0
    %648 = vmatpush1.bf16.msra.mxu0 0
    %649 = vmatprep.subr.bf16.mxu0 0
    %650 = vmatpush1.bf16.msra.mxu0 0
    %651 = vmatprep.subr.bf16.mxu0 0
    %652 = vmatpush1.bf16.msra.mxu0 0
    %653 = vmatprep.subr.bf16.mxu0 0
    %654 = vmatpush1.bf16.msra.mxu0 0
    %655 = vmatprep.subr.bf16.mxu0 0
    %656 = vmatpush1.bf16.msra.mxu0 0
    %657 = vmatprep.subr.bf16.mxu0 0
    %658 = vmatpush1.bf16.msra.mxu0 0
    %659 = vmatprep.subr.bf16.mxu0 0
    %660 = vmatpush1.bf16.msra.mxu0 0
    %661 = vmatprep.subr.bf16.mxu0 0
    %662 = vmatpush1.bf16.msra.mxu0 0
    %663 = vmatprep.subr.bf16.mxu0 0
    %664 = vmatpush1.bf16.msra.mxu0 0
    %665 = vmatprep.subr.bf16.mxu0 0
    %666 = vmatpush1.bf16.msra.mxu0 0
    %667 = vmatprep.subr.bf16.mxu0 0
    %668 = vmatpush1.bf16.msra.mxu0 0
    %669 = vmatprep.subr.bf16.mxu0 0
    %670 = vmatpush1.bf16.msra.mxu0 0
    %671 = vmatprep.subr.bf16.mxu0 0
    %672 = vmatpush1.bf16.msra.mxu0 0
    %673 = vmatprep.mubr.bf16.mxu0 0
    %674 = vmatmul.mubr.bf16.gmra.mrb[0].mxu0 %v639
    %v675 = vpop.f32.mrb[0].mxu0
    %v676 = vadd.f32 %v383, %v675
    %v677 = vpop.f32.mrb[0].mxu0
    %v678 = vpop.f32.mrb[0].mxu0
    %v679 = vpop.f32.mrb[0].mxu0
    %680 = vdwg.mxu0
    %v682 = vrot.slane %v676, 5
    %v684 = vadd.f32 %v374, %v682
    %v685 = vxor.u32 %v684, 2147483648
    %v686 = vmul.f32 %v685, 1.442695
    %v687 = vpow.pop %v686
    %v688 = vadd.f32 %v687, 1.0
    %v689 = vrcp.pop %v688
    %v690 = vmul.f32 1.0, %v689
    %691 = vrot.lane.b32.xlu0 %v682, 64
    %v692 = vpop.permute.xlu0 %691
    %v694 = vmul.f32 %v690, %v692
    %696 = vrot.lane.b32.xlu0 %v694, 64
    %v697 = vpop.permute.xlu0 %696
    %v699 = vadd.f32 %v374, %v697
    %v700 = vtanh.pop %v699
    %v701 = vsub.f32 1.0, %v690
    %703 = vrot.lane.b32.xlu0 %v700, 96
    %v704 = vpop.permute.xlu0 %703
    %v706 = vmul.f32 %v701, %v704
    %v708 = vrot.slane %v632, 7
    %v710 = vmul.f32 %v690, %v708
    %v711 = vadd.f32 %v706, %v710
    %v712 = vpack.c.bf16 %v711, %v711
    %v714 = vshrl.u32 %v712, 16
    %v716 = vrot.slane %v714, 1
    %717 = vrot.lane.b32.xlu0 %v716, 96
    %v718 = vpop.permute.xlu0 %717
    %v720 = vsel %vm203, %v718, 0
    %722 = vmatprep.subr.bf16.mxu0 0
    %723 = vmatpush1.bf16.msra.mxu0 %v394
    %724 = vmatprep.subr.bf16.mxu0 0
    %725 = vmatpush1.bf16.msra.mxu0 %v395
    %726 = vmatprep.subr.bf16.mxu0 0
    %727 = vmatpush1.bf16.msra.mxu0 0
    %728 = vmatprep.subr.bf16.mxu0 0
    %729 = vmatpush1.bf16.msra.mxu0 0
    %730 = vmatprep.subr.bf16.mxu0 0
    %731 = vmatpush1.bf16.msra.mxu0 0
    %732 = vmatprep.subr.bf16.mxu0 0
    %733 = vmatpush1.bf16.msra.mxu0 0
    %734 = vmatprep.subr.bf16.mxu0 0
    %735 = vmatpush1.bf16.msra.mxu0 0
    %736 = vmatprep.subr.bf16.mxu0 0
    %737 = vmatpush1.bf16.msra.mxu0 0
    %738 = vmatprep.subr.bf16.mxu0 0
    %739 = vmatpush1.bf16.msra.mxu0 0
    %740 = vmatprep.subr.bf16.mxu0 0
    %741 = vmatpush1.bf16.msra.mxu0 0
    %742 = vmatprep.subr.bf16.mxu0 0
    %743 = vmatpush1.bf16.msra.mxu0 0
    %744 = vmatprep.subr.bf16.mxu0 0
    %745 = vmatpush1.bf16.msra.mxu0 0
    %746 = vmatprep.subr.bf16.mxu0 0
    %747 = vmatpush1.bf16.msra.mxu0 0
    %748 = vmatprep.subr.bf16.mxu0 0
    %749 = vmatpush1.bf16.msra.mxu0 0
    %750 = vmatprep.subr.bf16.mxu0 0
    %751 = vmatpush1.bf16.msra.mxu0 0
    %752 = vmatprep.subr.bf16.mxu0 0
    %753 = vmatpush1.bf16.msra.mxu0 0
    %754 = vmatprep.mubr.bf16.mxu0 0
    %755 = vmatmul.mubr.bf16.gmra.mrb[0].mxu0 %v720
    %v756 = vpop.f32.mrb[0].mxu0
    %v757 = vadd.f32 %v383, %v756
    %v758 = vpop.f32.mrb[0].mxu0
    %v759 = vpop.f32.mrb[0].mxu0
    %v760 = vpop.f32.mrb[0].mxu0
    %761 = vdwg.mxu0
    %v763 = vrot.slane %v757, 4
    %v765 = vadd.f32 %v374, %v763
    %v766 = vxor.u32 %v765, 2147483648
    %v767 = vmul.f32 %v766, 1.442695
    %v768 = vpow.pop %v767
    %v769 = vadd.f32 %v768, 1.0
    %v770 = vrcp.pop %v769
    %v771 = vmul.f32 1.0, %v770
    %772 = vrot.lane.b32.xlu0 %v763, 64
    %v773 = vpop.permute.xlu0 %772
    %v775 = vmul.f32 %v771, %v773
    %777 = vrot.lane.b32.xlu0 %v775, 64
    %v778 = vpop.permute.xlu0 %777
    %v780 = vadd.f32 %v374, %v778
    %v781 = vtanh.pop %v780
    %v782 = vsub.f32 1.0, %v771
    %784 = vrot.lane.b32.xlu0 %v781, 96
    %v785 = vpop.permute.xlu0 %784
    %v787 = vmul.f32 %v782, %v785
    %v789 = vrot.slane %v711, 7
    %v791 = vmul.f32 %v771, %v789
    %v792 = vadd.f32 %v787, %v791
    %v793 = vpack.c.bf16 %v792, %v792
    %v795 = vrot.slane %v793, 2
    %796 = vrot.lane.b32.xlu0 %v795, 96
    %v797 = vpop.permute.xlu0 %796
    %v799 = vsel %vm203, %v797, 0
    %801 = vmatprep.subr.bf16.mxu0 0
    %802 = vmatpush1.bf16.msra.mxu0 %v394
    %803 = vmatprep.subr.bf16.mxu0 0
    %804 = vmatpush1.bf16.msra.mxu0 %v395
    %805 = vmatprep.subr.bf16.mxu0 0
    %806 = vmatpush1.bf16.msra.mxu0 0
    %807 = vmatprep.subr.bf16.mxu0 0
    %808 = vmatpush1.bf16.msra.mxu0 0
    %809 = vmatprep.subr.bf16.mxu0 0
    %810 = vmatpush1.bf16.msra.mxu0 0
    %811 = vmatprep.subr.bf16.mxu0 0
    %812 = vmatpush1.bf16.msra.mxu0 0
    %813 = vmatprep.subr.bf16.mxu0 0
    %814 = vmatpush1.bf16.msra.mxu0 0
    %815 = vmatprep.subr.bf16.mxu0 0
    %816 = vmatpush1.bf16.msra.mxu0 0
    %817 = vmatprep.subr.bf16.mxu0 0
    %818 = vmatpush1.bf16.msra.mxu0 0
    %819 = vmatprep.subr.bf16.mxu0 0
    %820 = vmatpush1.bf16.msra.mxu0 0
    %821 = vmatprep.subr.bf16.mxu0 0
    %822 = vmatpush1.bf16.msra.mxu0 0
    %823 = vmatprep.subr.bf16.mxu0 0
    %824 = vmatpush1.bf16.msra.mxu0 0
    %825 = vmatprep.subr.bf16.mxu0 0
    %826 = vmatpush1.bf16.msra.mxu0 0
    %827 = vmatprep.subr.bf16.mxu0 0
    %828 = vmatpush1.bf16.msra.mxu0 0
    %829 = vmatprep.subr.bf16.mxu0 0
    %830 = vmatpush1.bf16.msra.mxu0 0
    %831 = vmatprep.subr.bf16.mxu0 0
    %832 = vmatpush1.bf16.msra.mxu0 0
    %833 = vmatprep.mubr.bf16.mxu0 0
    %834 = vmatmul.mubr.bf16.gmra.mrb[0].mxu0 %v799
    %v835 = vpop.f32.mrb[0].mxu0
    %v836 = vadd.f32 %v383, %v835
    %v837 = vpop.f32.mrb[0].mxu0
    %v838 = vpop.f32.mrb[0].mxu0
    %v839 = vpop.f32.mrb[0].mxu0
    %840 = vdwg.mxu0
    %v842 = vrot.slane %v836, 3
    %v844 = vadd.f32 %v374, %v842
    %v845 = vxor.u32 %v844, 2147483648
    %v846 = vmul.f32 %v845, 1.442695
    %v847 = vpow.pop %v846
    %v848 = vadd.f32 %v847, 1.0
    %v849 = vrcp.pop %v848
    %v850 = vmul.f32 1.0, %v849
    %851 = vrot.lane.b32.xlu0 %v842, 64
    %v852 = vpop.permute.xlu0 %851
    %v854 = vmul.f32 %v850, %v852
    %856 = vrot.lane.b32.xlu0 %v854, 64
    %v857 = vpop.permute.xlu0 %856
    %v859 = vadd.f32 %v374, %v857
    %v860 = vtanh.pop %v859
    %v861 = vsub.f32 1.0, %v850
    %863 = vrot.lane.b32.xlu0 %v860, 96
    %v864 = vpop.permute.xlu0 %863
    %v866 = vmul.f32 %v861, %v864
    %v868 = vrot.slane %v792, 7
    %v870 = vmul.f32 %v850, %v868
    %v871 = vadd.f32 %v866, %v870
    %v872 = vpack.c.bf16 %v871, %v871
    %v874 = vshrl.u32 %v872, 16
    %v876 = vrot.slane %v874, 2
    %877 = vrot.lane.b32.xlu0 %v876, 96
    %v878 = vpop.permute.xlu0 %877
    %v880 = vsel %vm203, %v878, 0
    %882 = vmatprep.subr.bf16.mxu0 0
    %883 = vmatpush1.bf16.msra.mxu0 %v394
    %884 = vmatprep.subr.bf16.mxu0 0
    %885 = vmatpush1.bf16.msra.mxu0 %v395
    %886 = vmatprep.subr.bf16.mxu0 0
    %887 = vmatpush1.bf16.msra.mxu0 0
    %888 = vmatprep.subr.bf16.mxu0 0
    %889 = vmatpush1.bf16.msra.mxu0 0
    %890 = vmatprep.subr.bf16.mxu0 0
    %891 = vmatpush1.bf16.msra.mxu0 0
    %892 = vmatprep.subr.bf16.mxu0 0
    %893 = vmatpush1.bf16.msra.mxu0 0
    %894 = vmatprep.subr.bf16.mxu0 0
    %895 = vmatpush1.bf16.msra.mxu0 0
    %896 = vmatprep.subr.bf16.mxu0 0
    %897 = vmatpush1.bf16.msra.mxu0 0
    %898 = vmatprep.subr.bf16.mxu0 0
    %899 = vmatpush1.bf16.msra.mxu0 0
    %900 = vmatprep.subr.bf16.mxu0 0
    %901 = vmatpush1.bf16.msra.mxu0 0
    %902 = vmatprep.subr.bf16.mxu0 0
    %903 = vmatpush1.bf16.msra.mxu0 0
    %904 = vmatprep.subr.bf16.mxu0 0
    %905 = vmatpush1.bf16.msra.mxu0 0
    %906 = vmatprep.subr.bf16.mxu0 0
    %907 = vmatpush1.bf16.msra.mxu0 0
    %908 = vmatprep.subr.bf16.mxu0 0
    %909 = vmatpush1.bf16.msra.mxu0 0
    %910 = vmatprep.subr.bf16.mxu0 0
    %911 = vmatpush1.bf16.msra.mxu0 0
    %912 = vmatprep.subr.bf16.mxu0 0
    %913 = vmatpush1.bf16.msra.mxu0 0
    %914 = vmatprep.mubr.bf16.mxu0 0
    %915 = vmatmul.mubr.bf16.gmra.mrb[0].mxu0 %v880
    %v916 = vpop.f32.mrb[0].mxu0
    %v917 = vadd.f32 %v383, %v916
    %v918 = vpop.f32.mrb[0].mxu0
    %v919 = vpop.f32.mrb[0].mxu0
    %v920 = vpop.f32.mrb[0].mxu0
    %921 = vdwg.mxu0
    %v923 = vrot.slane %v917, 2
    %v925 = vadd.f32 %v374, %v923
    %v926 = vxor.u32 %v925, 2147483648
    %v927 = vmul.f32 %v926, 1.442695
    %v928 = vpow.pop %v927
    %v929 = vadd.f32 %v928, 1.0
    %v930 = vrcp.pop %v929
    %v931 = vmul.f32 1.0, %v930
    %932 = vrot.lane.b32.xlu0 %v923, 64
    %v933 = vpop.permute.xlu0 %932
    %v935 = vmul.f32 %v931, %v933
    %937 = vrot.lane.b32.xlu0 %v935, 64
    %v938 = vpop.permute.xlu0 %937
    %v940 = vadd.f32 %v374, %v938
    %v941 = vtanh.pop %v940
    %v942 = vsub.f32 1.0, %v931
    %944 = vrot.lane.b32.xlu0 %v941, 96
    %v945 = vpop.permute.xlu0 %944
    %v947 = vmul.f32 %v942, %v945
    %v949 = vrot.slane %v871, 7
    %v951 = vmul.f32 %v931, %v949
    %v952 = vadd.f32 %v947, %v951
    %v953 = vpack.c.bf16 %v952, %v952
    %v955 = vrot.slane %v953, 3
    %956 = vrot.lane.b32.xlu0 %v955, 96
    %v957 = vpop.permute.xlu0 %956
    %v959 = vsel %vm203, %v957, 0
    %961 = vmatprep.subr.bf16.mxu0 0
    %962 = vmatpush1.bf16.msra.mxu0 %v394
    %963 = vmatprep.subr.bf16.mxu0 0
    %964 = vmatpush1.bf16.msra.mxu0 %v395
    %965 = vmatprep.subr.bf16.mxu0 0
    %966 = vmatpush1.bf16.msra.mxu0 0
    %967 = vmatprep.subr.bf16.mxu0 0
    %968 = vmatpush1.bf16.msra.mxu0 0
    %969 = vmatprep.subr.bf16.mxu0 0
    %970 = vmatpush1.bf16.msra.mxu0 0
    %971 = vmatprep.subr.bf16.mxu0 0
    %972 = vmatpush1.bf16.msra.mxu0 0
    %973 = vmatprep.subr.bf16.mxu0 0
    %974 = vmatpush1.bf16.msra.mxu0 0
    %975 = vmatprep.subr.bf16.mxu0 0
    %976 = vmatpush1.bf16.msra.mxu0 0
    %977 = vmatprep.subr.bf16.mxu0 0
    %978 = vmatpush1.bf16.msra.mxu0 0
    %979 = vmatprep.subr.bf16.mxu0 0
    %980 = vmatpush1.bf16.msra.mxu0 0
    %981 = vmatprep.subr.bf16.mxu0 0
    %982 = vmatpush1.bf16.msra.mxu0 0
    %983 = vmatprep.subr.bf16.mxu0 0
    %984 = vmatpush1.bf16.msra.mxu0 0
    %985 = vmatprep.subr.bf16.mxu0 0
    %986 = vmatpush1.bf16.msra.mxu0 0
    %987 = vmatprep.subr.bf16.mxu0 0
    %988 = vmatpush1.bf16.msra.mxu0 0
    %989 = vmatprep.subr.bf16.mxu0 0
    %990 = vmatpush1.bf16.msra.mxu0 0
    %991 = vmatprep.subr.bf16.mxu0 0
    %992 = vmatpush1.bf16.msra.mxu0 0
    %993 = vmatprep.mubr.bf16.mxu0 0
    %994 = vmatmul.mubr.bf16.gmra.mrb[0].mxu0 %v959
    %v995 = vpop.f32.mrb[0].mxu0
    %v996 = vadd.f32 %v383, %v995
    %v997 = vpop.f32.mrb[0].mxu0
    %v998 = vpop.f32.mrb[0].mxu0
    %v999 = vpop.f32.mrb[0].mxu0
    %1000 = vdwg.mxu0
    %v1002 = vrot.slane %v996, 1
    %v1004 = vadd.f32 %v374, %v1002
    %v1005 = vxor.u32 %v1004, 2147483648
    %v1006 = vmul.f32 %v1005, 1.442695
    %v1007 = vpow.pop %v1006
    %v1008 = vadd.f32 %v1007, 1.0
    %v1009 = vrcp.pop %v1008
    %v1010 = vmul.f32 1.0, %v1009
    %1011 = vrot.lane.b32.xlu0 %v1002, 64
    %v1012 = vpop.permute.xlu0 %1011
    %v1014 = vmul.f32 %v1010, %v1012
    %1016 = vrot.lane.b32.xlu0 %v1014, 64
    %v1017 = vpop.permute.xlu0 %1016
    %v1019 = vadd.f32 %v374, %v1017
    %v1020 = vtanh.pop %v1019
    %v1021 = vsub.f32 1.0, %v1010
    %1023 = vrot.lane.b32.xlu0 %v1020, 96
    %v1024 = vpop.permute.xlu0 %1023
    %v1026 = vmul.f32 %v1021, %v1024
    %v1028 = vrot.slane %v952, 7
    %v1030 = vmul.f32 %v1010, %v1028
    %v1031 = vadd.f32 %v1026, %v1030
    %1033 = vrot.lane.b32.xlu0 %v1031, 96
    %v1034 = vpop.permute.xlu0 %1033
    %vm1036 = vcmask 261127
    %1037 = vst.msk [vmem:[#allocation6 - $0x7] sm:$0x80] %vm1036, %v1034
    %vm1038 = vcmask 1040384
    %v1039 = vsel %vm1038, %v474, %v552
    %vm1040 = vcmask 1041408
    %v1041 = vsel %vm1040, %v1039, %v632
    %vm1042 = vcmask 1042432
    %v1043 = vsel %vm1042, %v1041, %v711
    %vm1044 = vcmask 1043456
    %v1045 = vsel %vm1044, %v1043, %v792
    %vm1046 = vcmask 1044480
    %v1047 = vsel %vm1046, %v1045, %v871
    %vm1048 = vcmask 1045504
    %v1049 = vsel %vm1048, %v1047, %v952
    %vm1050 = vcmask 1046528
    %v1051 = vsel %vm1050, %v1049, %v1031
    %v1052 = vpack.c.bf16 %v1051, %v1051
    %v1053 = vld [vmem:[#allocation2 + $0x68] sm:$0xf]
    %v1054 = vld [vmem:[#allocation2 + $0x6c] sm:$0xf]
    %v1055 = vld [vmem:[#allocation2 + $0x70] sm:$0xf]
    %v1056 = vld [vmem:[#allocation2 + $0x74] sm:$0xf]
    %v1057 = vld [vmem:[#allocation2 + $0x78] sm:$0xf]
    %v1058 = vld [vmem:[#allocation2 + $0x7c] sm:$0xf]
    %v1061 = vunpack.c.l.b16 %v1057
    %v1062 = vunpack.c.l.b16 %v1058
    %v1063 = vpack.c.b16 %v1062, %v1061
    %1065 = vmatprep.subr.bf16.mxu0 0
    %1066 = vmatpush1.bf16.msra.mxu0 %v1063
    %1067 = vmatprep.subr.bf16.mxu0 0
    %1068 = vmatpush1.bf16.msra.mxu0 0
    %1069 = vmatprep.subr.bf16.mxu0 0
    %1070 = vmatpush1.bf16.msra.mxu0 0
    %1071 = vmatprep.subr.bf16.mxu0 0
    %1072 = vmatpush1.bf16.msra.mxu0 0
    %1073 = vmatprep.subr.bf16.mxu0 0
    %1074 = vmatpush1.bf16.msra.mxu0 0
    %1075 = vmatprep.subr.bf16.mxu0 0
    %1076 = vmatpush1.bf16.msra.mxu0 0
    %1077 = vmatprep.subr.bf16.mxu0 0
    %1078 = vmatpush1.bf16.msra.mxu0 0
    %1079 = vmatprep.subr.bf16.mxu0 0
    %1080 = vmatpush1.bf16.msra.mxu0 0
    %1081 = vmatprep.subr.bf16.mxu0 0
    %1082 = vmatpush1.bf16.msra.mxu0 0
    %1083 = vmatprep.subr.bf16.mxu0 0
    %1084 = vmatpush1.bf16.msra.mxu0 0
    %1085 = vmatprep.subr.bf16.mxu0 0
    %1086 = vmatpush1.bf16.msra.mxu0 0
    %1087 = vmatprep.subr.bf16.mxu0 0
    %1088 = vmatpush1.bf16.msra.mxu0 0
    %1089 = vmatprep.subr.bf16.mxu0 0
    %1090 = vmatpush1.bf16.msra.mxu0 0
    %1091 = vmatprep.subr.bf16.mxu0 0
    %1092 = vmatpush1.bf16.msra.mxu0 0
    %1093 = vmatprep.subr.bf16.mxu0 0
    %1094 = vmatpush1.bf16.msra.mxu0 0
    %1095 = vmatprep.subr.bf16.mxu0 0
    %1096 = vmatpush1.bf16.msra.mxu0 0
    %1097 = vmatprep.mubr.bf16.mxu0 0
    %1098 = vmatmul.mubr.bf16.gmra.mrb[0].mxu0 %v138
    %v1099 = vpop.f32.mrb[0].mxu0
    %v1100 = vadd.f32 0.0, %v1099
    %v1101 = vpop.f32.mrb[0].mxu0
    %v1102 = vpop.f32.mrb[0].mxu0
    %v1103 = vpop.f32.mrb[0].mxu0
    %1104 = vdwg.mxu0
    %1106 = vrot.lane.b32.xlu0 %v1052, 96
    %v1107 = vpop.permute.xlu0 %1106
    %v1112 = vunpack.c.l.b16 %v1053
    %v1113 = vunpack.c.l.b16 %v1054
    %v1114 = vunpack.c.l.b16 %v1055
    %v1115 = vunpack.c.l.b16 %v1056
    %v1116 = vpack.c.b16 %v1113, %v1112
    %v1117 = vpack.c.b16 %v1115, %v1114
    %v1121 = vsel %vm203, %v1107, 0
    %1123 = vmatprep.subr.bf16.mxu0 0
    %1124 = vmatpush1.bf16.msra.mxu0 %v1116
    %1125 = vmatprep.subr.bf16.mxu0 0
    %1126 = vmatpush1.bf16.msra.mxu0 %v1117
    %1127 = vmatprep.subr.bf16.mxu0 0
    %1128 = vmatpush1.bf16.msra.mxu0 0
    %1129 = vmatprep.subr.bf16.mxu0 0
    %1130 = vmatpush1.bf16.msra.mxu0 0
    %1131 = vmatprep.subr.bf16.mxu0 0
    %1132 = vmatpush1.bf16.msra.mxu0 0
    %1133 = vmatprep.subr.bf16.mxu0 0
    %1134 = vmatpush1.bf16.msra.mxu0 0
    %1135 = vmatprep.subr.bf16.mxu0 0
    %1136 = vmatpush1.bf16.msra.mxu0 0
    %1137 = vmatprep.subr.bf16.mxu0 0
    %1138 = vmatpush1.bf16.msra.mxu0 0
    %1139 = vmatprep.subr.bf16.mxu0 0
    %1140 = vmatpush1.bf16.msra.mxu0 0
    %1141 = vmatprep.subr.bf16.mxu0 0
    %1142 = vmatpush1.bf16.msra.mxu0 0
    %1143 = vmatprep.subr.bf16.mxu0 0
    %1144 = vmatpush1.bf16.msra.mxu0 0
    %1145 = vmatprep.subr.bf16.mxu0 0
    %1146 = vmatpush1.bf16.msra.mxu0 0
    %1147 = vmatprep.subr.bf16.mxu0 0
    %1148 = vmatpush1.bf16.msra.mxu0 0
    %1149 = vmatprep.subr.bf16.mxu0 0
    %1150 = vmatpush1.bf16.msra.mxu0 0
    %1151 = vmatprep.subr.bf16.mxu0 0
    %1152 = vmatpush1.bf16.msra.mxu0 0
    %1153 = vmatprep.subr.bf16.mxu0 0
    %1154 = vmatpush1.bf16.msra.mxu0 0
    %1155 = vmatprep.mubr.bf16.mxu0 0
    %1156 = vmatmul.mubr.bf16.gmra.mrb[0].mxu0 %v1121
    %v1157 = vpop.f32.mrb[0].mxu0
    %v1158 = vadd.f32 %v1100, %v1157
    %v1159 = vpop.f32.mrb[0].mxu0
    %v1160 = vpop.f32.mrb[0].mxu0
    %v1161 = vpop.f32.mrb[0].mxu0
    %1162 = vdwg.mxu0
    %v1163 = vld [vmem:[%s3 + $0x5] sm:$0x1]
    %v1164 = vlaneseq
    %v1165 = vshrl.u32 %v1164, 7
    %v1166 = vsub.s32 0, %v1165
    %v1167 = vrot.slane %v1163, %v1166
    %v1168 = vadd.f32 %v1158, %v1167
    %1169 = vmax.xlane.f32.xlu0 %v1168
    %v1170 = vpop.xlane.xlu0 %1169
    %v1171 = vsub.f32 %v1168, %v1170
    %v1172 = vmul.f32 %v1171, 1.442695
    %v1173 = vpow.pop %v1172
    %1174 = vadd.xlane.f32.xlu0 %v1173
    %v1175 = vpop.xlane.xlu0 %1174
    %v1176 = vlog2.pop %v1175
    %v1177 = vmul.f32 %v1176, 0.6931472
    %v1178 = vsub.f32 %v1171, %v1177
    %1179 = vst [vmem:[#allocation5] sm:$0xff] %v1178
    // Predicated region
    $region22: #{tpu_custom_call.1} parent=1 // pred_check
      _
    $region23: #{tpu_custom_call.1} parent=1 // pred_check_branch
      %1181 = sbr.rel (0) target = $region25
    $region24: #{tpu_custom_call.1} parent=1 // pred_region
      %s1183 = ssub.s32 128, 128
      %1184 = vsyncadd [#allocation4], %s1183
      %s1186 = sshll.u32 [#allocation5], 4
      %s1187 = int_to_ptr.vmem [resolvable:$true] %s1186
      %1189 = dma.vmem_to_hbm [thread:$0]  %s1187, 128, %s4, [#allocation4]
    $region25: #{tpu_custom_call.1} parent=1 // pred_fallthru
      _
    // Predicated region
    $region26: #{tpu_custom_call.1} parent=1 // pred_check
      _
    $region27: #{tpu_custom_call.1} parent=1 // pred_check_branch
      %1191 = sbr.rel (0) target = $region29
    $region28: #{tpu_custom_call.1} parent=1 // pred_region
      %s1193 = ssub.s32 16, 16
      %1194 = vsyncadd [#allocation7], %s1193
      %s1196 = sshll.u32 [#allocation6], 4
      %s1197 = int_to_ptr.vmem [resolvable:$true] %s1196
      %1199 = dma.vmem_to_hbm [thread:$0]  %s1197, 16, %s5, [#allocation7]
    $region29: #{tpu_custom_call.1} parent=1 // pred_fallthru
      _
    // Predicated region
    $region30: #{tpu_custom_call.1} parent=1 // pred_check
      _
    $region31: #{tpu_custom_call.1} parent=1 // pred_check_branch
      %1201 = sbr.rel (0) target = $region33
    $region32: #{tpu_custom_call.1} parent=1 // pred_region
      %1202 = dma.done [#allocation4], 128
    $region33: #{tpu_custom_call.1} parent=1 // pred_fallthru
      _
    // Predicated region
    $region34: #{tpu_custom_call.1} parent=1 // pred_check
      _
    $region35: #{tpu_custom_call.1} parent=1 // pred_check_branch
      %1204 = sbr.rel (0) target = $region37
    $region36: #{tpu_custom_call.1} parent=1 // pred_region
      %1205 = dma.done [#allocation7], 16
    $region37: #{tpu_custom_call.1} parent=1 // pred_fallthru
      _
    %1206 = vsyncpa [#allocation3], 1
    %1207 = vsyncpa [#allocation4], 1
    %1208 = vsyncpa [#allocation7], 1

</llo_original>
